<compile_context>
chip_gen: v7x
topology: tpu7x:2x2x1
jax: 0.10.0
libtpu: 0.0.40
codegen_flags: <defaults>
</compile_context>

<pallas_src>
import jax
import jax.numpy as jnp
from jax.experimental import pallas as pl
from jax.experimental.pallas import tpu as pltpu


# -----------------------------------------------------------------------------
# Kernel factory: everything static (B, T, H, L, O, per-step valid counts) is
# closed over; the kernel takes exactly 3 tensor inputs + 1 output.
#   x_ref  : (T*B, H)        bf16  time-major rows (row = t*B + b), features 0-padded to H
#   w_ref  : ((2L+1)*H, 4H)  bf16  [Wih_0;Whh_0;...;Wih_{L-1};Whh_{L-1};fc_w]
#   b_ref  : (L+1, 4H)       f32   fused layer biases + fc bias (cols >= O are 0)
#   out_ref: (T*B, O)        f32
# -----------------------------------------------------------------------------
def _make_fused_kernel(B, T, H, L, O, step_valid):
    BF = jnp.bfloat16

    def kernel(x_ref, w_ref, b_ref, out_ref):
        # Per-step validity masks.  Lengths are sorted descending, so the valid
        # rows at step t are the prefix [0, step_valid[t]).  Fully-live steps get
        # no mask ops at all (folded away at trace time).
        if any(nv < B for nv in step_valid):
            row_iota = jax.lax.broadcasted_iota(jnp.int32, (B, 1), 0)  # hoisted once
            masks = [None if nv >= B else (row_iota < nv) for nv in step_valid]
        else:
            masks = [None] * T

        def recurrence(proj_at, whh_bf):
            """LSTM time recurrence; proj_at(t) -> (B, 4H) f32 = x_t @ Wih + bias."""
            h = jnp.zeros((B, H), jnp.float32)
            c = jnp.zeros((B, H), jnp.float32)
            outs = []
            for t in range(T):                                  # fully unrolled
                gates = proj_at(t) + jnp.dot(h.astype(BF), whh_bf,
                                             preferred_element_type=jnp.float32)
                # Gate order (i,f,o,g): one sigmoid over [0:3H), one tanh over [3H:4H).
                sig = jax.nn.sigmoid(gates[:, :3 * H])
                i_g = sig[:, 0:H]
                f_g = sig[:, H:2 * H]
                o_g = sig[:, 2 * H:3 * H]
                g_g = jnp.tanh(gates[:, 3 * H:])
                c_new = f_g * c + i_g * g_g
                h_new = o_g * jnp.tanh(c_new)
                mv = masks[t]
                if mv is None:                                  # all sequences live
                    h, c = h_new, c_new
                    outs.append(h_new)
                else:                                           # freeze state / zero output
                    h = jnp.where(mv, h_new, h)
                    c = jnp.where(mv, c_new, c)
                    outs.append(jnp.where(mv, h_new, jnp.zeros_like(h_new)))
            return outs

        # ---- layer 0: input projection hoisted into ONE (T*B,H)@(H,4H) matmul ----
        proj0 = jnp.dot(x_ref[...], w_ref[0:H, :],
                        preferred_element_type=jnp.float32) + b_ref[0:1, :]
        outs = recurrence(lambda t: proj0[t * B:(t + 1) * B, :], w_ref[H:2 * H, :])

        # ---- deeper layers: per-step projection of previous layer's outputs ----
        for l in range(1, L):
            wih = w_ref[2 * H * l:2 * H * l + H, :]
            whh = w_ref[2 * H * l + H:2 * H * (l + 1), :]
            bias = b_ref[l:l + 1, :]
            prev = outs
            outs = recurrence(
                lambda t, prev=prev, wih=wih, bias=bias:
                    jnp.dot(prev[t].astype(BF), wih,
                            preferred_element_type=jnp.float32) + bias,
                whh)

        # ---- fc2 + sigmoid head: ONE matmul, ONE store ----
        h_all = jnp.concatenate(outs, axis=0)                       # (T*B, H) f32
        logits = jnp.dot(h_all.astype(BF), w_ref[2 * H * L:2 * H * L + H, :],
                         preferred_element_type=jnp.float32) + b_ref[L:L + 1, :]
        out_ref[...] = jax.nn.sigmoid(logits[:, :O]).astype(out_ref.dtype)

    return kernel


# -----------------------------------------------------------------------------
# Full forward (matches VanillaLSTM.forward).  x: (B, T, in); lengths: Python
# ints sorted descending (they define the output shape, so they are static).
# -----------------------------------------------------------------------------
def vanilla_lstm_forward(x, lengths, packed, *, hidden_size, num_layers, output_size):
    w_packed, b_packed = packed
    B, T_in, IN = x.shape
    H, L, O = hidden_size, num_layers, output_size
    assert IN <= H, "packing pads layer-0 input features up to hidden_size"

    lens = [int(v) for v in lengths]
    assert all(lens[i] >= lens[i + 1] for i in range(len(lens) - 1)), \
        "lengths must be sorted descending (pack_padded_sequence enforce_sorted)"
    T = max(lens)                       # pad_packed_sequence pads to max(length)
    assert T <= T_in

    # Number of still-live sequences at each step (prefix mask, computed at trace time).
    step_valid = [sum(lv > t for lv in lens) for t in range(T)]

    # Tiny, XLA-fused prep: keep first T steps, time-major flatten, zero-pad the
    # feature dim to H (matches the zero-padded rows of the packed layer-0 Wih),
    # cast to bf16.
    x_tm = jnp.transpose(x[:, :T, :], (1, 0, 2)).reshape(T * B, IN)
    x_tm = jnp.pad(x_tm, ((0, 0), (0, H - IN))).astype(jnp.bfloat16)

    kernel = _make_fused_kernel(B, T, H, L, O, step_valid)
    out_tm = pl.pallas_call(
        kernel,
        out_shape=jax.ShapeDtypeStruct((T * B, O), jnp.float32),
        grid_spec=pltpu.PrefetchScalarGridSpec(
            num_scalar_prefetch=0,
            grid=(1,),                   # single fused invocation; all state on chip
            in_specs=[
                pl.BlockSpec((T * B, H), lambda i: (0, 0)),
                pl.BlockSpec(w_packed.shape, lambda i: (0, 0)),
                pl.BlockSpec(b_packed.shape, lambda i: (0, 0)),
            ],
            out_specs=pl.BlockSpec((T * B, O), lambda i: (0, 0)),
        ),
        compiler_params=pltpu.CompilerParams(dimension_semantics=("arbitrary",)),
    )(x_tm, w_packed, b_packed)

    # Cheap reorder on a tiny array: time-major (t*B+b) -> batch-major (b*T+t),
    # matching PyTorch's batch_first pad_packed_sequence + .view(-1, O).
    return out_tm.reshape(T, B, O).transpose(1, 0, 2).reshape(B * T, O)


# -----------------------------------------------------------------------------
# Parameter construction in native PyTorch layout (nn.LSTM / nn.Linear shapes).
# -----------------------------------------------------------------------------
def init_params(key, input_size, hidden_size, num_layers, output_size):
    H = hidden_size
    scale = 1.0 / (H ** 0.5)
    layers = []
    for layer in range(num_layers):
        in_dim = input_size if layer == 0 else H
        key, k1, k2, k3, k4 = jax.random.split(key, 5)
        w_ih = jax.random.uniform(k1, (4 * H, in_dim), jnp.float32, -scale, scale)
        w_hh = jax.random.uniform(k2, (4 * H, H), jnp.float32, -scale, scale)
        b_ih = jax.random.uniform(k3, (4 * H,), jnp.float32, -scale, scale)
        b_hh = jax.random.uniform(k4, (4 * H,), jnp.float32, -scale, scale)
        layers.append((w_ih, w_hh, b_ih, b_hh))
    key, k5, k6 = jax.random.split(key, 3)
    fc_w = jax.random.uniform(k5, (output_size, H), jnp.float32, -scale, scale)
    fc_b = jax.random.uniform(k6, (output_size,), jnp.float32, -scale, scale)
    return {"layers": layers, "fc_w": fc_w, "fc_b": fc_b}


def pack_params(params, input_size, hidden_size, output_size):
    """Pack ALL weights into one bf16 array and ALL biases into one f32 array.

    Weight rows ((2L+1)*H x 4H), gate columns permuted (i,f,g,o) -> (i,f,o,g):
      [2H*l     : 2H*l+H ) : W_ih_l^T (layer 0 zero-padded from input_size to H rows)
      [2H*l+H   : 2H*(l+1)) : W_hh_l^T
      [2H*L     : 2H*L+H )  : fc weight^T embedded in columns [0:O)
    Bias rows (L+1 x 4H): row l = b_ih_l + b_hh_l (permuted); row L = fc bias in [0:O).
    """
    H, O = hidden_size, output_size
    G = 4 * H

    def perm(wT):  # permute the 4H columns from (i,f,g,o) to (i,f,o,g)
        return jnp.concatenate(
            [wT[:, :H], wT[:, H:2 * H], wT[:, 3 * H:], wT[:, 2 * H:3 * H]], axis=1)

    w_blocks, b_rows = [], []
    for l, (w_ih, w_hh, b_ih, b_hh) in enumerate(params["layers"]):
        wih_T = perm(w_ih.T)
        if l == 0:
            wih_T = jnp.pad(wih_T, ((0, H - input_size), (0, 0)))
        w_blocks += [wih_T, perm(w_hh.T)]
        b_rows.append(perm((b_ih + b_hh)[None, :]))
    fc_blk = jnp.zeros((H, G), jnp.float32).at[:, :O].set(params["fc_w"].T)
    w_blocks.append(fc_blk)
    b_rows.append(jnp.zeros((1, G), jnp.float32).at[0, :O].set(params["fc_b"]))

    w_packed = jnp.concatenate(w_blocks, axis=0).astype(jnp.bfloat16)
    b_packed = jnp.concatenate(b_rows, axis=0).astype(jnp.float32)
    return w_packed, b_packed


# -----------------------------------------------------------------------------
# Pure-JAX reference (no Pallas), PyTorch gate order, same bf16-operand /
# f32-accumulate matmul precision as the kernel (per review's correctness note).
# -----------------------------------------------------------------------------
def reference_forward(x, lengths, params, hidden_size, output_size):
    B, _, _ = x.shape
    H = hidden_size
    T = int(max(lengths))
    lens = jnp.asarray([int(v) for v in lengths], jnp.int32)
    BF = jnp.bfloat16

    h_seq = jnp.transpose(x[:, :T], (1, 0, 2)).astype(jnp.float32)   # (T, B, IN)
    for (w_ih, w_hh, b_ih, b_hh) in params["layers"]:
        wih_T = w_ih.T.astype(BF)
        whh_T = w_hh.T.astype(BF)
        bias = (b_ih + b_hh)[None, :]
        hs = jnp.zeros((B, H), jnp.float32)
        cs = jnp.zeros((B, H), jnp.float32)
        outs = []
        for t in range(T):
            gates = (jnp.dot(h_seq[t].astype(BF), wih_T, preferred_element_type=jnp.float32)
                     + jnp.dot(hs.astype(BF), whh_T, preferred_element_type=jnp.float32)
                     + bias)
            i_g = jax.nn.sigmoid(gates[:, :H])
            f_g = jax.nn.sigmoid(gates[:, H:2 * H])
            g_g = jnp.tanh(gates[:, 2 * H:3 * H])
            o_g = jax.nn.sigmoid(gates[:, 3 * H:])
            c_new = f_g * cs + i_g * g_g
            h_new = o_g * jnp.tanh(c_new)
            m = (t < lens)[:, None]
            hs = jnp.where(m, h_new, hs)
            cs = jnp.where(m, c_new, cs)
            outs.append(jnp.where(m, h_new, 0.0))
        h_seq = jnp.stack(outs)
    feats = jnp.transpose(h_seq, (1, 0, 2)).reshape(-1, H)
    logits = (jnp.dot(feats.astype(BF), params["fc_w"].T.astype(BF),
                      preferred_element_type=jnp.float32) + params["fc_b"][None, :])
    return jax.nn.sigmoid(logits)


if __name__ == "__main__":
    input_size, hidden_size, num_layers = 4, 32, 2
    batch_size, output_size, seq_len = 2, 2, 8
    lengths = [8, 5]   # sorted descending (pack_padded_sequence enforce_sorted)

    key = jax.random.PRNGKey(0)
    k_param, k_x = jax.random.split(key)
    params = init_params(k_param, input_size, hidden_size, num_layers, output_size)
    packed = pack_params(params, input_size, hidden_size, output_size)
    x = jax.random.normal(k_x, (batch_size, seq_len, input_size), jnp.float32)

    out = vanilla_lstm_forward(x, lengths, packed,
                               hidden_size=hidden_size, num_layers=num_layers,
                               output_size=output_size)
    out = jax.block_until_ready(out)

    ref = reference_forward(x, lengths, params, hidden_size, output_size)
    assert out.shape == (batch_size * max(lengths), output_size), out.shape
    assert jnp.allclose(out, ref, atol=1e-3, rtol=1e-3), \
        f"max abs diff = {float(jnp.max(jnp.abs(out - ref)))}"

    print("KERNEL_OK")
</pallas_src>

<mosaic_0001>
module attributes {stable_mosaic.version = 11 : i64} {
  func.func @kernel(%arg0: i32, %arg1: memref<16x32xbf16, #tpu.memory_space<vmem>>, %arg2: memref<160x128xbf16, #tpu.memory_space<vmem>>, %arg3: memref<3x128xf32, #tpu.memory_space<vmem>>, %arg4: memref<16x2xf32, #tpu.memory_space<vmem>>) attributes {dimension_semantics = [#tpu.dimension_semantics<arbitrary>], iteration_bounds = array<i64: 1>, scalar_prefetch = 0 : i64, scratch_operands = 0 : i64, tpu.core_type = #tpu.core_type<tc>, window_params = [{pipeline_mode = #tpu.pipeline_mode<synchronous>, transform_indices = @transform_0, window_bounds = array<i64: 16, 32>}, {pipeline_mode = #tpu.pipeline_mode<synchronous>, transform_indices = @transform_1, window_bounds = array<i64: 160, 128>}, {pipeline_mode = #tpu.pipeline_mode<synchronous>, transform_indices = @transform_2, window_bounds = array<i64: 3, 128>}, {pipeline_mode = #tpu.pipeline_mode<synchronous>, transform_indices = @transform_3, window_bounds = array<i64: 16, 2>}]} {
    %0 = tpu.iota {dimensions = array<i32: 0>} : vector<2x1xi32>
    %c1_i32 = arith.constant 1 : i32
    %1 = vector.broadcast %c1_i32 : i32 to vector<2x1xi32>
    %2 = arith.cmpi slt, %0, %1 : vector<2x1xi32>
    %c1_i32_0 = arith.constant 1 : i32
    %3 = vector.broadcast %c1_i32_0 : i32 to vector<2x1xi32>
    %4 = arith.cmpi slt, %0, %3 : vector<2x1xi32>
    %c1_i32_1 = arith.constant 1 : i32
    %5 = vector.broadcast %c1_i32_1 : i32 to vector<2x1xi32>
    %6 = arith.cmpi slt, %0, %5 : vector<2x1xi32>
    %c0 = arith.constant 0 : index
    %c0_2 = arith.constant 0 : index
    %7 = vector.load %arg1[%c0, %c0_2] : memref<16x32xbf16, #tpu.memory_space<vmem>>, vector<16x32xbf16>
    %c0_3 = arith.constant 0 : index
    %c0_4 = arith.constant 0 : index
    %8 = vector.load %arg2[%c0_3, %c0_4] : memref<160x128xbf16, #tpu.memory_space<vmem>>, vector<32x128xbf16>
    %cst = arith.constant dense<0.000000e+00> : vector<16x128xf32>
    %9 = tpu.matmul %7, %8, %cst {dimension_numbers = #tpu.dot_dimension_numbers<[1], [0], [0], [1], [0, 0, 1, 1], [], []>} : vector<16x32xbf16>, vector<32x128xbf16>, vector<16x128xf32> -> vector<16x128xf32>
    %c0_5 = arith.constant 0 : index
    %c0_6 = arith.constant 0 : index
    %10 = vector.load %arg3[%c0_5, %c0_6] : memref<3x128xf32, #tpu.memory_space<vmem>>, vector<1x128xf32>
    %11 = vector.broadcast %10 : vector<1x128xf32> to vector<16x128xf32>
    %12 = arith.addf %9, %11 : vector<16x128xf32>
    %c32 = arith.constant 32 : index
    %c0_7 = arith.constant 0 : index
    %13 = vector.load %arg2[%c32, %c0_7] : memref<160x128xbf16, #tpu.memory_space<vmem>>, vector<32x128xbf16>
    %cst_8 = arith.constant 0.000000e+00 : f32
    %14 = vector.broadcast %cst_8 : f32 to vector<2x32xf32>
    %cst_9 = arith.constant 0.000000e+00 : f32
    %15 = vector.broadcast %cst_9 : f32 to vector<2x32xf32>
    %16 = vector.extract_strided_slice %12 {offsets = [0, 0], sizes = [2, 128], strides = [1, 1]} : vector<16x128xf32> to vector<2x128xf32>
    %17 = arith.truncf %14 : vector<2x32xf32> to vector<2x32xbf16>
    %cst_10 = arith.constant dense<0.000000e+00> : vector<2x128xf32>
    %18 = tpu.matmul %17, %13, %cst_10 {dimension_numbers = #tpu.dot_dimension_numbers<[1], [0], [0], [1], [0, 0, 1, 1], [], []>} : vector<2x32xbf16>, vector<32x128xbf16>, vector<2x128xf32> -> vector<2x128xf32>
    %19 = arith.addf %16, %18 : vector<2x128xf32>
    %20 = vector.extract_strided_slice %19 {offsets = [0, 0], sizes = [2, 96], strides = [1, 1]} : vector<2x128xf32> to vector<2x96xf32>
    %21 = arith.negf %20 : vector<2x96xf32>
    %22 = math.exp %21 : vector<2x96xf32>
    %cst_11 = arith.constant 1.000000e+00 : f32
    %23 = vector.broadcast %cst_11 : f32 to vector<2x96xf32>
    %24 = arith.addf %23, %22 : vector<2x96xf32>
    %25 = arith.divf %23, %24 : vector<2x96xf32>
    %26 = vector.extract_strided_slice %25 {offsets = [0, 0], sizes = [2, 32], strides = [1, 1]} : vector<2x96xf32> to vector<2x32xf32>
    %27 = vector.extract_strided_slice %25 {offsets = [0, 32], sizes = [2, 32], strides = [1, 1]} : vector<2x96xf32> to vector<2x32xf32>
    %28 = vector.extract_strided_slice %25 {offsets = [0, 64], sizes = [2, 32], strides = [1, 1]} : vector<2x96xf32> to vector<2x32xf32>
    %29 = vector.extract_strided_slice %19 {offsets = [0, 96], sizes = [2, 32], strides = [1, 1]} : vector<2x128xf32> to vector<2x32xf32>
    %30 = math.tanh %29 : vector<2x32xf32>
    %31 = arith.mulf %27, %15 : vector<2x32xf32>
    %32 = arith.mulf %26, %30 : vector<2x32xf32>
    %33 = arith.addf %31, %32 : vector<2x32xf32>
    %34 = math.tanh %33 : vector<2x32xf32>
    %35 = arith.mulf %28, %34 : vector<2x32xf32>
    %36 = vector.extract_strided_slice %12 {offsets = [2, 0], sizes = [2, 128], strides = [1, 1]} : vector<16x128xf32> to vector<2x128xf32>
    %37 = arith.truncf %35 : vector<2x32xf32> to vector<2x32xbf16>
    %cst_12 = arith.constant dense<0.000000e+00> : vector<2x128xf32>
    %38 = tpu.matmul %37, %13, %cst_12 {dimension_numbers = #tpu.dot_dimension_numbers<[1], [0], [0], [1], [0, 0, 1, 1], [], []>} : vector<2x32xbf16>, vector<32x128xbf16>, vector<2x128xf32> -> vector<2x128xf32>
    %39 = arith.addf %36, %38 : vector<2x128xf32>
    %40 = vector.extract_strided_slice %39 {offsets = [0, 0], sizes = [2, 96], strides = [1, 1]} : vector<2x128xf32> to vector<2x96xf32>
    %41 = arith.negf %40 : vector<2x96xf32>
    %42 = math.exp %41 : vector<2x96xf32>
    %cst_13 = arith.constant 1.000000e+00 : f32
    %43 = vector.broadcast %cst_13 : f32 to vector<2x96xf32>
    %44 = arith.addf %43, %42 : vector<2x96xf32>
    %45 = arith.divf %43, %44 : vector<2x96xf32>
    %46 = vector.extract_strided_slice %45 {offsets = [0, 0], sizes = [2, 32], strides = [1, 1]} : vector<2x96xf32> to vector<2x32xf32>
    %47 = vector.extract_strided_slice %45 {offsets = [0, 32], sizes = [2, 32], strides = [1, 1]} : vector<2x96xf32> to vector<2x32xf32>
    %48 = vector.extract_strided_slice %45 {offsets = [0, 64], sizes = [2, 32], strides = [1, 1]} : vector<2x96xf32> to vector<2x32xf32>
    %49 = vector.extract_strided_slice %39 {offsets = [0, 96], sizes = [2, 32], strides = [1, 1]} : vector<2x128xf32> to vector<2x32xf32>
    %50 = math.tanh %49 : vector<2x32xf32>
    %51 = arith.mulf %47, %33 : vector<2x32xf32>
    %52 = arith.mulf %46, %50 : vector<2x32xf32>
    %53 = arith.addf %51, %52 : vector<2x32xf32>
    %54 = math.tanh %53 : vector<2x32xf32>
    %55 = arith.mulf %48, %54 : vector<2x32xf32>
    %56 = vector.extract_strided_slice %12 {offsets = [4, 0], sizes = [2, 128], strides = [1, 1]} : vector<16x128xf32> to vector<2x128xf32>
    %57 = arith.truncf %55 : vector<2x32xf32> to vector<2x32xbf16>
    %cst_14 = arith.constant dense<0.000000e+00> : vector<2x128xf32>
    %58 = tpu.matmul %57, %13, %cst_14 {dimension_numbers = #tpu.dot_dimension_numbers<[1], [0], [0], [1], [0, 0, 1, 1], [], []>} : vector<2x32xbf16>, vector<32x128xbf16>, vector<2x128xf32> -> vector<2x128xf32>
    %59 = arith.addf %56, %58 : vector<2x128xf32>
    %60 = vector.extract_strided_slice %59 {offsets = [0, 0], sizes = [2, 96], strides = [1, 1]} : vector<2x128xf32> to vector<2x96xf32>
    %61 = arith.negf %60 : vector<2x96xf32>
    %62 = math.exp %61 : vector<2x96xf32>
    %cst_15 = arith.constant 1.000000e+00 : f32
    %63 = vector.broadcast %cst_15 : f32 to vector<2x96xf32>
    %64 = arith.addf %63, %62 : vector<2x96xf32>
    %65 = arith.divf %63, %64 : vector<2x96xf32>
    %66 = vector.extract_strided_slice %65 {offsets = [0, 0], sizes = [2, 32], strides = [1, 1]} : vector<2x96xf32> to vector<2x32xf32>
    %67 = vector.extract_strided_slice %65 {offsets = [0, 32], sizes = [2, 32], strides = [1, 1]} : vector<2x96xf32> to vector<2x32xf32>
    %68 = vector.extract_strided_slice %65 {offsets = [0, 64], sizes = [2, 32], strides = [1, 1]} : vector<2x96xf32> to vector<2x32xf32>
    %69 = vector.extract_strided_slice %59 {offsets = [0, 96], sizes = [2, 32], strides = [1, 1]} : vector<2x128xf32> to vector<2x32xf32>
    %70 = math.tanh %69 : vector<2x32xf32>
    %71 = arith.mulf %67, %53 : vector<2x32xf32>
    %72 = arith.mulf %66, %70 : vector<2x32xf32>
    %73 = arith.addf %71, %72 : vector<2x32xf32>
    %74 = math.tanh %73 : vector<2x32xf32>
    %75 = arith.mulf %68, %74 : vector<2x32xf32>
    %76 = vector.extract_strided_slice %12 {offsets = [6, 0], sizes = [2, 128], strides = [1, 1]} : vector<16x128xf32> to vector<2x128xf32>
    %77 = arith.truncf %75 : vector<2x32xf32> to vector<2x32xbf16>
    %cst_16 = arith.constant dense<0.000000e+00> : vector<2x128xf32>
    %78 = tpu.matmul %77, %13, %cst_16 {dimension_numbers = #tpu.dot_dimension_numbers<[1], [0], [0], [1], [0, 0, 1, 1], [], []>} : vector<2x32xbf16>, vector<32x128xbf16>, vector<2x128xf32> -> vector<2x128xf32>
    %79 = arith.addf %76, %78 : vector<2x128xf32>
    %80 = vector.extract_strided_slice %79 {offsets = [0, 0], sizes = [2, 96], strides = [1, 1]} : vector<2x128xf32> to vector<2x96xf32>
    %81 = arith.negf %80 : vector<2x96xf32>
    %82 = math.exp %81 : vector<2x96xf32>
    %cst_17 = arith.constant 1.000000e+00 : f32
    %83 = vector.broadcast %cst_17 : f32 to vector<2x96xf32>
    %84 = arith.addf %83, %82 : vector<2x96xf32>
    %85 = arith.divf %83, %84 : vector<2x96xf32>
    %86 = vector.extract_strided_slice %85 {offsets = [0, 0], sizes = [2, 32], strides = [1, 1]} : vector<2x96xf32> to vector<2x32xf32>
    %87 = vector.extract_strided_slice %85 {offsets = [0, 32], sizes = [2, 32], strides = [1, 1]} : vector<2x96xf32> to vector<2x32xf32>
    %88 = vector.extract_strided_slice %85 {offsets = [0, 64], sizes = [2, 32], strides = [1, 1]} : vector<2x96xf32> to vector<2x32xf32>
    %89 = vector.extract_strided_slice %79 {offsets = [0, 96], sizes = [2, 32], strides = [1, 1]} : vector<2x128xf32> to vector<2x32xf32>
    %90 = math.tanh %89 : vector<2x32xf32>
    %91 = arith.mulf %87, %73 : vector<2x32xf32>
    %92 = arith.mulf %86, %90 : vector<2x32xf32>
    %93 = arith.addf %91, %92 : vector<2x32xf32>
    %94 = math.tanh %93 : vector<2x32xf32>
    %95 = arith.mulf %88, %94 : vector<2x32xf32>
    %96 = vector.extract_strided_slice %12 {offsets = [8, 0], sizes = [2, 128], strides = [1, 1]} : vector<16x128xf32> to vector<2x128xf32>
    %97 = arith.truncf %95 : vector<2x32xf32> to vector<2x32xbf16>
    %cst_18 = arith.constant dense<0.000000e+00> : vector<2x128xf32>
    %98 = tpu.matmul %97, %13, %cst_18 {dimension_numbers = #tpu.dot_dimension_numbers<[1], [0], [0], [1], [0, 0, 1, 1], [], []>} : vector<2x32xbf16>, vector<32x128xbf16>, vector<2x128xf32> -> vector<2x128xf32>
    %99 = arith.addf %96, %98 : vector<2x128xf32>
    %100 = vector.extract_strided_slice %99 {offsets = [0, 0], sizes = [2, 96], strides = [1, 1]} : vector<2x128xf32> to vector<2x96xf32>
    %101 = arith.negf %100 : vector<2x96xf32>
    %102 = math.exp %101 : vector<2x96xf32>
    %cst_19 = arith.constant 1.000000e+00 : f32
    %103 = vector.broadcast %cst_19 : f32 to vector<2x96xf32>
    %104 = arith.addf %103, %102 : vector<2x96xf32>
    %105 = arith.divf %103, %104 : vector<2x96xf32>
    %106 = vector.extract_strided_slice %105 {offsets = [0, 0], sizes = [2, 32], strides = [1, 1]} : vector<2x96xf32> to vector<2x32xf32>
    %107 = vector.extract_strided_slice %105 {offsets = [0, 32], sizes = [2, 32], strides = [1, 1]} : vector<2x96xf32> to vector<2x32xf32>
    %108 = vector.extract_strided_slice %105 {offsets = [0, 64], sizes = [2, 32], strides = [1, 1]} : vector<2x96xf32> to vector<2x32xf32>
    %109 = vector.extract_strided_slice %99 {offsets = [0, 96], sizes = [2, 32], strides = [1, 1]} : vector<2x128xf32> to vector<2x32xf32>
    %110 = math.tanh %109 : vector<2x32xf32>
    %111 = arith.mulf %107, %93 : vector<2x32xf32>
    %112 = arith.mulf %106, %110 : vector<2x32xf32>
    %113 = arith.addf %111, %112 : vector<2x32xf32>
    %114 = math.tanh %113 : vector<2x32xf32>
    %115 = arith.mulf %108, %114 : vector<2x32xf32>
    %116 = vector.extract_strided_slice %12 {offsets = [10, 0], sizes = [2, 128], strides = [1, 1]} : vector<16x128xf32> to vector<2x128xf32>
    %117 = arith.truncf %115 : vector<2x32xf32> to vector<2x32xbf16>
    %cst_20 = arith.constant dense<0.000000e+00> : vector<2x128xf32>
    %118 = tpu.matmul %117, %13, %cst_20 {dimension_numbers = #tpu.dot_dimension_numbers<[1], [0], [0], [1], [0, 0, 1, 1], [], []>} : vector<2x32xbf16>, vector<32x128xbf16>, vector<2x128xf32> -> vector<2x128xf32>
    %119 = arith.addf %116, %118 : vector<2x128xf32>
    %120 = vector.extract_strided_slice %119 {offsets = [0, 0], sizes = [2, 96], strides = [1, 1]} : vector<2x128xf32> to vector<2x96xf32>
    %121 = arith.negf %120 : vector<2x96xf32>
    %122 = math.exp %121 : vector<2x96xf32>
    %cst_21 = arith.constant 1.000000e+00 : f32
    %123 = vector.broadcast %cst_21 : f32 to vector<2x96xf32>
    %124 = arith.addf %123, %122 : vector<2x96xf32>
    %125 = arith.divf %123, %124 : vector<2x96xf32>
    %126 = vector.extract_strided_slice %125 {offsets = [0, 0], sizes = [2, 32], strides = [1, 1]} : vector<2x96xf32> to vector<2x32xf32>
    %127 = vector.extract_strided_slice %125 {offsets = [0, 32], sizes = [2, 32], strides = [1, 1]} : vector<2x96xf32> to vector<2x32xf32>
    %128 = vector.extract_strided_slice %125 {offsets = [0, 64], sizes = [2, 32], strides = [1, 1]} : vector<2x96xf32> to vector<2x32xf32>
    %129 = vector.extract_strided_slice %119 {offsets = [0, 96], sizes = [2, 32], strides = [1, 1]} : vector<2x128xf32> to vector<2x32xf32>
    %130 = math.tanh %129 : vector<2x32xf32>
    %131 = arith.mulf %127, %113 : vector<2x32xf32>
    %132 = arith.mulf %126, %130 : vector<2x32xf32>
    %133 = arith.addf %131, %132 : vector<2x32xf32>
    %134 = math.tanh %133 : vector<2x32xf32>
    %135 = arith.mulf %128, %134 : vector<2x32xf32>
    %136 = vector.shape_cast %2 : vector<2x1xi1> to vector<2x1xi1>
    %137 = vector.broadcast %136 : vector<2x1xi1> to vector<2x32xi1>
    %138 = arith.select %137, %135, %115 : vector<2x32xi1>, vector<2x32xf32>
    %139 = vector.shape_cast %2 : vector<2x1xi1> to vector<2x1xi1>
    %140 = vector.broadcast %139 : vector<2x1xi1> to vector<2x32xi1>
    %141 = arith.select %140, %133, %113 : vector<2x32xi1>, vector<2x32xf32>
    %cst_22 = arith.constant 0.000000e+00 : f32
    %142 = vector.broadcast %cst_22 : f32 to vector<2x32xf32>
    %143 = vector.shape_cast %2 : vector<2x1xi1> to vector<2x1xi1>
    %144 = vector.broadcast %143 : vector<2x1xi1> to vector<2x32xi1>
    %145 = arith.select %144, %135, %142 : vector<2x32xi1>, vector<2x32xf32>
    %146 = vector.extract_strided_slice %12 {offsets = [12, 0], sizes = [2, 128], strides = [1, 1]} : vector<16x128xf32> to vector<2x128xf32>
    %147 = arith.truncf %138 : vector<2x32xf32> to vector<2x32xbf16>
    %cst_23 = arith.constant dense<0.000000e+00> : vector<2x128xf32>
    %148 = tpu.matmul %147, %13, %cst_23 {dimension_numbers = #tpu.dot_dimension_numbers<[1], [0], [0], [1], [0, 0, 1, 1], [], []>} : vector<2x32xbf16>, vector<32x128xbf16>, vector<2x128xf32> -> vector<2x128xf32>
    %149 = arith.addf %146, %148 : vector<2x128xf32>
    %150 = vector.extract_strided_slice %149 {offsets = [0, 0], sizes = [2, 96], strides = [1, 1]} : vector<2x128xf32> to vector<2x96xf32>
    %151 = arith.negf %150 : vector<2x96xf32>
    %152 = math.exp %151 : vector<2x96xf32>
    %cst_24 = arith.constant 1.000000e+00 : f32
    %153 = vector.broadcast %cst_24 : f32 to vector<2x96xf32>
    %154 = arith.addf %153, %152 : vector<2x96xf32>
    %155 = arith.divf %153, %154 : vector<2x96xf32>
    %156 = vector.extract_strided_slice %155 {offsets = [0, 0], sizes = [2, 32], strides = [1, 1]} : vector<2x96xf32> to vector<2x32xf32>
    %157 = vector.extract_strided_slice %155 {offsets = [0, 32], sizes = [2, 32], strides = [1, 1]} : vector<2x96xf32> to vector<2x32xf32>
    %158 = vector.extract_strided_slice %155 {offsets = [0, 64], sizes = [2, 32], strides = [1, 1]} : vector<2x96xf32> to vector<2x32xf32>
    %159 = vector.extract_strided_slice %149 {offsets = [0, 96], sizes = [2, 32], strides = [1, 1]} : vector<2x128xf32> to vector<2x32xf32>
    %160 = math.tanh %159 : vector<2x32xf32>
    %161 = arith.mulf %157, %141 : vector<2x32xf32>
    %162 = arith.mulf %156, %160 : vector<2x32xf32>
    %163 = arith.addf %161, %162 : vector<2x32xf32>
    %164 = math.tanh %163 : vector<2x32xf32>
    %165 = arith.mulf %158, %164 : vector<2x32xf32>
    %166 = vector.shape_cast %4 : vector<2x1xi1> to vector<2x1xi1>
    %167 = vector.broadcast %166 : vector<2x1xi1> to vector<2x32xi1>
    %168 = arith.select %167, %165, %138 : vector<2x32xi1>, vector<2x32xf32>
    %169 = vector.shape_cast %4 : vector<2x1xi1> to vector<2x1xi1>
    %170 = vector.broadcast %169 : vector<2x1xi1> to vector<2x32xi1>
    %171 = arith.select %170, %163, %141 : vector<2x32xi1>, vector<2x32xf32>
    %cst_25 = arith.constant 0.000000e+00 : f32
    %172 = vector.broadcast %cst_25 : f32 to vector<2x32xf32>
    %173 = vector.shape_cast %4 : vector<2x1xi1> to vector<2x1xi1>
    %174 = vector.broadcast %173 : vector<2x1xi1> to vector<2x32xi1>
    %175 = arith.select %174, %165, %172 : vector<2x32xi1>, vector<2x32xf32>
    %176 = vector.extract_strided_slice %12 {offsets = [14, 0], sizes = [2, 128], strides = [1, 1]} : vector<16x128xf32> to vector<2x128xf32>
    %177 = arith.truncf %168 : vector<2x32xf32> to vector<2x32xbf16>
    %cst_26 = arith.constant dense<0.000000e+00> : vector<2x128xf32>
    %178 = tpu.matmul %177, %13, %cst_26 {dimension_numbers = #tpu.dot_dimension_numbers<[1], [0], [0], [1], [0, 0, 1, 1], [], []>} : vector<2x32xbf16>, vector<32x128xbf16>, vector<2x128xf32> -> vector<2x128xf32>
    %179 = arith.addf %176, %178 : vector<2x128xf32>
    %180 = vector.extract_strided_slice %179 {offsets = [0, 0], sizes = [2, 96], strides = [1, 1]} : vector<2x128xf32> to vector<2x96xf32>
    %181 = arith.negf %180 : vector<2x96xf32>
    %182 = math.exp %181 : vector<2x96xf32>
    %cst_27 = arith.constant 1.000000e+00 : f32
    %183 = vector.broadcast %cst_27 : f32 to vector<2x96xf32>
    %184 = arith.addf %183, %182 : vector<2x96xf32>
    %185 = arith.divf %183, %184 : vector<2x96xf32>
    %186 = vector.extract_strided_slice %185 {offsets = [0, 0], sizes = [2, 32], strides = [1, 1]} : vector<2x96xf32> to vector<2x32xf32>
    %187 = vector.extract_strided_slice %185 {offsets = [0, 32], sizes = [2, 32], strides = [1, 1]} : vector<2x96xf32> to vector<2x32xf32>
    %188 = vector.extract_strided_slice %185 {offsets = [0, 64], sizes = [2, 32], strides = [1, 1]} : vector<2x96xf32> to vector<2x32xf32>
    %189 = vector.extract_strided_slice %179 {offsets = [0, 96], sizes = [2, 32], strides = [1, 1]} : vector<2x128xf32> to vector<2x32xf32>
    %190 = math.tanh %189 : vector<2x32xf32>
    %191 = arith.mulf %187, %171 : vector<2x32xf32>
    %192 = arith.mulf %186, %190 : vector<2x32xf32>
    %193 = arith.addf %191, %192 : vector<2x32xf32>
    %194 = math.tanh %193 : vector<2x32xf32>
    %195 = arith.mulf %188, %194 : vector<2x32xf32>
    %cst_28 = arith.constant 0.000000e+00 : f32
    %196 = vector.broadcast %cst_28 : f32 to vector<2x32xf32>
    %197 = vector.shape_cast %6 : vector<2x1xi1> to vector<2x1xi1>
    %198 = vector.broadcast %197 : vector<2x1xi1> to vector<2x32xi1>
    %199 = arith.select %198, %195, %196 : vector<2x32xi1>, vector<2x32xf32>
    %c64 = arith.constant 64 : index
    %c0_29 = arith.constant 0 : index
    %200 = vector.load %arg2[%c64, %c0_29] : memref<160x128xbf16, #tpu.memory_space<vmem>>, vector<32x128xbf16>
    %c96 = arith.constant 96 : index
    %c0_30 = arith.constant 0 : index
    %201 = vector.load %arg2[%c96, %c0_30] : memref<160x128xbf16, #tpu.memory_space<vmem>>, vector<32x128xbf16>
    %c1 = arith.constant 1 : index
    %c0_31 = arith.constant 0 : index
    %202 = vector.load %arg3[%c1, %c0_31] : memref<3x128xf32, #tpu.memory_space<vmem>>, vector<1x128xf32>
    %cst_32 = arith.constant 0.000000e+00 : f32
    %203 = vector.broadcast %cst_32 : f32 to vector<2x32xf32>
    %cst_33 = arith.constant 0.000000e+00 : f32
    %204 = vector.broadcast %cst_33 : f32 to vector<2x32xf32>
    %205 = arith.truncf %35 : vector<2x32xf32> to vector<2x32xbf16>
    %cst_34 = arith.constant dense<0.000000e+00> : vector<2x128xf32>
    %206 = tpu.matmul %205, %200, %cst_34 {dimension_numbers = #tpu.dot_dimension_numbers<[1], [0], [0], [1], [0, 0, 1, 1], [], []>} : vector<2x32xbf16>, vector<32x128xbf16>, vector<2x128xf32> -> vector<2x128xf32>
    %207 = vector.broadcast %202 : vector<1x128xf32> to vector<2x128xf32>
    %208 = arith.addf %206, %207 : vector<2x128xf32>
    %209 = arith.truncf %203 : vector<2x32xf32> to vector<2x32xbf16>
    %cst_35 = arith.constant dense<0.000000e+00> : vector<2x128xf32>
    %210 = tpu.matmul %209, %201, %cst_35 {dimension_numbers = #tpu.dot_dimension_numbers<[1], [0], [0], [1], [0, 0, 1, 1], [], []>} : vector<2x32xbf16>, vector<32x128xbf16>, vector<2x128xf32> -> vector<2x128xf32>
    %211 = arith.addf %208, %210 : vector<2x128xf32>
    %212 = vector.extract_strided_slice %211 {offsets = [0, 0], sizes = [2, 96], strides = [1, 1]} : vector<2x128xf32> to vector<2x96xf32>
    %213 = arith.negf %212 : vector<2x96xf32>
    %214 = math.exp %213 : vector<2x96xf32>
    %cst_36 = arith.constant 1.000000e+00 : f32
    %215 = vector.broadcast %cst_36 : f32 to vector<2x96xf32>
    %216 = arith.addf %215, %214 : vector<2x96xf32>
    %217 = arith.divf %215, %216 : vector<2x96xf32>
    %218 = vector.extract_strided_slice %217 {offsets = [0, 0], sizes = [2, 32], strides = [1, 1]} : vector<2x96xf32> to vector<2x32xf32>
    %219 = vector.extract_strided_slice %217 {offsets = [0, 32], sizes = [2, 32], strides = [1, 1]} : vector<2x96xf32> to vector<2x32xf32>
    %220 = vector.extract_strided_slice %217 {offsets = [0, 64], sizes = [2, 32], strides = [1, 1]} : vector<2x96xf32> to vector<2x32xf32>
    %221 = vector.extract_strided_slice %211 {offsets = [0, 96], sizes = [2, 32], strides = [1, 1]} : vector<2x128xf32> to vector<2x32xf32>
    %222 = math.tanh %221 : vector<2x32xf32>
    %223 = arith.mulf %219, %204 : vector<2x32xf32>
    %224 = arith.mulf %218, %222 : vector<2x32xf32>
    %225 = arith.addf %223, %224 : vector<2x32xf32>
    %226 = math.tanh %225 : vector<2x32xf32>
    %227 = arith.mulf %220, %226 : vector<2x32xf32>
    %228 = arith.truncf %55 : vector<2x32xf32> to vector<2x32xbf16>
    %cst_37 = arith.constant dense<0.000000e+00> : vector<2x128xf32>
    %229 = tpu.matmul %228, %200, %cst_37 {dimension_numbers = #tpu.dot_dimension_numbers<[1], [0], [0], [1], [0, 0, 1, 1], [], []>} : vector<2x32xbf16>, vector<32x128xbf16>, vector<2x128xf32> -> vector<2x128xf32>
    %230 = vector.broadcast %202 : vector<1x128xf32> to vector<2x128xf32>
    %231 = arith.addf %229, %230 : vector<2x128xf32>
    %232 = arith.truncf %227 : vector<2x32xf32> to vector<2x32xbf16>
    %cst_38 = arith.constant dense<0.000000e+00> : vector<2x128xf32>
    %233 = tpu.matmul %232, %201, %cst_38 {dimension_numbers = #tpu.dot_dimension_numbers<[1], [0], [0], [1], [0, 0, 1, 1], [], []>} : vector<2x32xbf16>, vector<32x128xbf16>, vector<2x128xf32> -> vector<2x128xf32>
    %234 = arith.addf %231, %233 : vector<2x128xf32>
    %235 = vector.extract_strided_slice %234 {offsets = [0, 0], sizes = [2, 96], strides = [1, 1]} : vector<2x128xf32> to vector<2x96xf32>
    %236 = arith.negf %235 : vector<2x96xf32>
    %237 = math.exp %236 : vector<2x96xf32>
    %cst_39 = arith.constant 1.000000e+00 : f32
    %238 = vector.broadcast %cst_39 : f32 to vector<2x96xf32>
    %239 = arith.addf %238, %237 : vector<2x96xf32>
    %240 = arith.divf %238, %239 : vector<2x96xf32>
    %241 = vector.extract_strided_slice %240 {offsets = [0, 0], sizes = [2, 32], strides = [1, 1]} : vector<2x96xf32> to vector<2x32xf32>
    %242 = vector.extract_strided_slice %240 {offsets = [0, 32], sizes = [2, 32], strides = [1, 1]} : vector<2x96xf32> to vector<2x32xf32>
    %243 = vector.extract_strided_slice %240 {offsets = [0, 64], sizes = [2, 32], strides = [1, 1]} : vector<2x96xf32> to vector<2x32xf32>
    %244 = vector.extract_strided_slice %234 {offsets = [0, 96], sizes = [2, 32], strides = [1, 1]} : vector<2x128xf32> to vector<2x32xf32>
    %245 = math.tanh %244 : vector<2x32xf32>
    %246 = arith.mulf %242, %225 : vector<2x32xf32>
    %247 = arith.mulf %241, %245 : vector<2x32xf32>
    %248 = arith.addf %246, %247 : vector<2x32xf32>
    %249 = math.tanh %248 : vector<2x32xf32>
    %250 = arith.mulf %243, %249 : vector<2x32xf32>
    %251 = arith.truncf %75 : vector<2x32xf32> to vector<2x32xbf16>
    %cst_40 = arith.constant dense<0.000000e+00> : vector<2x128xf32>
    %252 = tpu.matmul %251, %200, %cst_40 {dimension_numbers = #tpu.dot_dimension_numbers<[1], [0], [0], [1], [0, 0, 1, 1], [], []>} : vector<2x32xbf16>, vector<32x128xbf16>, vector<2x128xf32> -> vector<2x128xf32>
    %253 = vector.broadcast %202 : vector<1x128xf32> to vector<2x128xf32>
    %254 = arith.addf %252, %253 : vector<2x128xf32>
    %255 = arith.truncf %250 : vector<2x32xf32> to vector<2x32xbf16>
    %cst_41 = arith.constant dense<0.000000e+00> : vector<2x128xf32>
    %256 = tpu.matmul %255, %201, %cst_41 {dimension_numbers = #tpu.dot_dimension_numbers<[1], [0], [0], [1], [0, 0, 1, 1], [], []>} : vector<2x32xbf16>, vector<32x128xbf16>, vector<2x128xf32> -> vector<2x128xf32>
    %257 = arith.addf %254, %256 : vector<2x128xf32>
    %258 = vector.extract_strided_slice %257 {offsets = [0, 0], sizes = [2, 96], strides = [1, 1]} : vector<2x128xf32> to vector<2x96xf32>
    %259 = arith.negf %258 : vector<2x96xf32>
    %260 = math.exp %259 : vector<2x96xf32>
    %cst_42 = arith.constant 1.000000e+00 : f32
    %261 = vector.broadcast %cst_42 : f32 to vector<2x96xf32>
    %262 = arith.addf %261, %260 : vector<2x96xf32>
    %263 = arith.divf %261, %262 : vector<2x96xf32>
    %264 = vector.extract_strided_slice %263 {offsets = [0, 0], sizes = [2, 32], strides = [1, 1]} : vector<2x96xf32> to vector<2x32xf32>
    %265 = vector.extract_strided_slice %263 {offsets = [0, 32], sizes = [2, 32], strides = [1, 1]} : vector<2x96xf32> to vector<2x32xf32>
    %266 = vector.extract_strided_slice %263 {offsets = [0, 64], sizes = [2, 32], strides = [1, 1]} : vector<2x96xf32> to vector<2x32xf32>
    %267 = vector.extract_strided_slice %257 {offsets = [0, 96], sizes = [2, 32], strides = [1, 1]} : vector<2x128xf32> to vector<2x32xf32>
    %268 = math.tanh %267 : vector<2x32xf32>
    %269 = arith.mulf %265, %248 : vector<2x32xf32>
    %270 = arith.mulf %264, %268 : vector<2x32xf32>
    %271 = arith.addf %269, %270 : vector<2x32xf32>
    %272 = math.tanh %271 : vector<2x32xf32>
    %273 = arith.mulf %266, %272 : vector<2x32xf32>
    %274 = arith.truncf %95 : vector<2x32xf32> to vector<2x32xbf16>
    %cst_43 = arith.constant dense<0.000000e+00> : vector<2x128xf32>
    %275 = tpu.matmul %274, %200, %cst_43 {dimension_numbers = #tpu.dot_dimension_numbers<[1], [0], [0], [1], [0, 0, 1, 1], [], []>} : vector<2x32xbf16>, vector<32x128xbf16>, vector<2x128xf32> -> vector<2x128xf32>
    %276 = vector.broadcast %202 : vector<1x128xf32> to vector<2x128xf32>
    %277 = arith.addf %275, %276 : vector<2x128xf32>
    %278 = arith.truncf %273 : vector<2x32xf32> to vector<2x32xbf16>
    %cst_44 = arith.constant dense<0.000000e+00> : vector<2x128xf32>
    %279 = tpu.matmul %278, %201, %cst_44 {dimension_numbers = #tpu.dot_dimension_numbers<[1], [0], [0], [1], [0, 0, 1, 1], [], []>} : vector<2x32xbf16>, vector<32x128xbf16>, vector<2x128xf32> -> vector<2x128xf32>
    %280 = arith.addf %277, %279 : vector<2x128xf32>
    %281 = vector.extract_strided_slice %280 {offsets = [0, 0], sizes = [2, 96], strides = [1, 1]} : vector<2x128xf32> to vector<2x96xf32>
    %282 = arith.negf %281 : vector<2x96xf32>
    %283 = math.exp %282 : vector<2x96xf32>
    %cst_45 = arith.constant 1.000000e+00 : f32
    %284 = vector.broadcast %cst_45 : f32 to vector<2x96xf32>
    %285 = arith.addf %284, %283 : vector<2x96xf32>
    %286 = arith.divf %284, %285 : vector<2x96xf32>
    %287 = vector.extract_strided_slice %286 {offsets = [0, 0], sizes = [2, 32], strides = [1, 1]} : vector<2x96xf32> to vector<2x32xf32>
    %288 = vector.extract_strided_slice %286 {offsets = [0, 32], sizes = [2, 32], strides = [1, 1]} : vector<2x96xf32> to vector<2x32xf32>
    %289 = vector.extract_strided_slice %286 {offsets = [0, 64], sizes = [2, 32], strides = [1, 1]} : vector<2x96xf32> to vector<2x32xf32>
    %290 = vector.extract_strided_slice %280 {offsets = [0, 96], sizes = [2, 32], strides = [1, 1]} : vector<2x128xf32> to vector<2x32xf32>
    %291 = math.tanh %290 : vector<2x32xf32>
    %292 = arith.mulf %288, %271 : vector<2x32xf32>
    %293 = arith.mulf %287, %291 : vector<2x32xf32>
    %294 = arith.addf %292, %293 : vector<2x32xf32>
    %295 = math.tanh %294 : vector<2x32xf32>
    %296 = arith.mulf %289, %295 : vector<2x32xf32>
    %297 = arith.truncf %115 : vector<2x32xf32> to vector<2x32xbf16>
    %cst_46 = arith.constant dense<0.000000e+00> : vector<2x128xf32>
    %298 = tpu.matmul %297, %200, %cst_46 {dimension_numbers = #tpu.dot_dimension_numbers<[1], [0], [0], [1], [0, 0, 1, 1], [], []>} : vector<2x32xbf16>, vector<32x128xbf16>, vector<2x128xf32> -> vector<2x128xf32>
    %299 = vector.broadcast %202 : vector<1x128xf32> to vector<2x128xf32>
    %300 = arith.addf %298, %299 : vector<2x128xf32>
    %301 = arith.truncf %296 : vector<2x32xf32> to vector<2x32xbf16>
    %cst_47 = arith.constant dense<0.000000e+00> : vector<2x128xf32>
    %302 = tpu.matmul %301, %201, %cst_47 {dimension_numbers = #tpu.dot_dimension_numbers<[1], [0], [0], [1], [0, 0, 1, 1], [], []>} : vector<2x32xbf16>, vector<32x128xbf16>, vector<2x128xf32> -> vector<2x128xf32>
    %303 = arith.addf %300, %302 : vector<2x128xf32>
    %304 = vector.extract_strided_slice %303 {offsets = [0, 0], sizes = [2, 96], strides = [1, 1]} : vector<2x128xf32> to vector<2x96xf32>
    %305 = arith.negf %304 : vector<2x96xf32>
    %306 = math.exp %305 : vector<2x96xf32>
    %cst_48 = arith.constant 1.000000e+00 : f32
    %307 = vector.broadcast %cst_48 : f32 to vector<2x96xf32>
    %308 = arith.addf %307, %306 : vector<2x96xf32>
    %309 = arith.divf %307, %308 : vector<2x96xf32>
    %310 = vector.extract_strided_slice %309 {offsets = [0, 0], sizes = [2, 32], strides = [1, 1]} : vector<2x96xf32> to vector<2x32xf32>
    %311 = vector.extract_strided_slice %309 {offsets = [0, 32], sizes = [2, 32], strides = [1, 1]} : vector<2x96xf32> to vector<2x32xf32>
    %312 = vector.extract_strided_slice %309 {offsets = [0, 64], sizes = [2, 32], strides = [1, 1]} : vector<2x96xf32> to vector<2x32xf32>
    %313 = vector.extract_strided_slice %303 {offsets = [0, 96], sizes = [2, 32], strides = [1, 1]} : vector<2x128xf32> to vector<2x32xf32>
    %314 = math.tanh %313 : vector<2x32xf32>
    %315 = arith.mulf %311, %294 : vector<2x32xf32>
    %316 = arith.mulf %310, %314 : vector<2x32xf32>
    %317 = arith.addf %315, %316 : vector<2x32xf32>
    %318 = math.tanh %317 : vector<2x32xf32>
    %319 = arith.mulf %312, %318 : vector<2x32xf32>
    %320 = arith.truncf %145 : vector<2x32xf32> to vector<2x32xbf16>
    %cst_49 = arith.constant dense<0.000000e+00> : vector<2x128xf32>
    %321 = tpu.matmul %320, %200, %cst_49 {dimension_numbers = #tpu.dot_dimension_numbers<[1], [0], [0], [1], [0, 0, 1, 1], [], []>} : vector<2x32xbf16>, vector<32x128xbf16>, vector<2x128xf32> -> vector<2x128xf32>
    %322 = vector.broadcast %202 : vector<1x128xf32> to vector<2x128xf32>
    %323 = arith.addf %321, %322 : vector<2x128xf32>
    %324 = arith.truncf %319 : vector<2x32xf32> to vector<2x32xbf16>
    %cst_50 = arith.constant dense<0.000000e+00> : vector<2x128xf32>
    %325 = tpu.matmul %324, %201, %cst_50 {dimension_numbers = #tpu.dot_dimension_numbers<[1], [0], [0], [1], [0, 0, 1, 1], [], []>} : vector<2x32xbf16>, vector<32x128xbf16>, vector<2x128xf32> -> vector<2x128xf32>
    %326 = arith.addf %323, %325 : vector<2x128xf32>
    %327 = vector.extract_strided_slice %326 {offsets = [0, 0], sizes = [2, 96], strides = [1, 1]} : vector<2x128xf32> to vector<2x96xf32>
    %328 = arith.negf %327 : vector<2x96xf32>
    %329 = math.exp %328 : vector<2x96xf32>
    %cst_51 = arith.constant 1.000000e+00 : f32
    %330 = vector.broadcast %cst_51 : f32 to vector<2x96xf32>
    %331 = arith.addf %330, %329 : vector<2x96xf32>
    %332 = arith.divf %330, %331 : vector<2x96xf32>
    %333 = vector.extract_strided_slice %332 {offsets = [0, 0], sizes = [2, 32], strides = [1, 1]} : vector<2x96xf32> to vector<2x32xf32>
    %334 = vector.extract_strided_slice %332 {offsets = [0, 32], sizes = [2, 32], strides = [1, 1]} : vector<2x96xf32> to vector<2x32xf32>
    %335 = vector.extract_strided_slice %332 {offsets = [0, 64], sizes = [2, 32], strides = [1, 1]} : vector<2x96xf32> to vector<2x32xf32>
    %336 = vector.extract_strided_slice %326 {offsets = [0, 96], sizes = [2, 32], strides = [1, 1]} : vector<2x128xf32> to vector<2x32xf32>
    %337 = math.tanh %336 : vector<2x32xf32>
    %338 = arith.mulf %334, %317 : vector<2x32xf32>
    %339 = arith.mulf %333, %337 : vector<2x32xf32>
    %340 = arith.addf %338, %339 : vector<2x32xf32>
    %341 = math.tanh %340 : vector<2x32xf32>
    %342 = arith.mulf %335, %341 : vector<2x32xf32>
    %343 = vector.shape_cast %2 : vector<2x1xi1> to vector<2x1xi1>
    %344 = vector.broadcast %343 : vector<2x1xi1> to vector<2x32xi1>
    %345 = arith.select %344, %342, %319 : vector<2x32xi1>, vector<2x32xf32>
    %346 = vector.shape_cast %2 : vector<2x1xi1> to vector<2x1xi1>
    %347 = vector.broadcast %346 : vector<2x1xi1> to vector<2x32xi1>
    %348 = arith.select %347, %340, %317 : vector<2x32xi1>, vector<2x32xf32>
    %cst_52 = arith.constant 0.000000e+00 : f32
    %349 = vector.broadcast %cst_52 : f32 to vector<2x32xf32>
    %350 = vector.shape_cast %2 : vector<2x1xi1> to vector<2x1xi1>
    %351 = vector.broadcast %350 : vector<2x1xi1> to vector<2x32xi1>
    %352 = arith.select %351, %342, %349 : vector<2x32xi1>, vector<2x32xf32>
    %353 = arith.truncf %175 : vector<2x32xf32> to vector<2x32xbf16>
    %cst_53 = arith.constant dense<0.000000e+00> : vector<2x128xf32>
    %354 = tpu.matmul %353, %200, %cst_53 {dimension_numbers = #tpu.dot_dimension_numbers<[1], [0], [0], [1], [0, 0, 1, 1], [], []>} : vector<2x32xbf16>, vector<32x128xbf16>, vector<2x128xf32> -> vector<2x128xf32>
    %355 = vector.broadcast %202 : vector<1x128xf32> to vector<2x128xf32>
    %356 = arith.addf %354, %355 : vector<2x128xf32>
    %357 = arith.truncf %345 : vector<2x32xf32> to vector<2x32xbf16>
    %cst_54 = arith.constant dense<0.000000e+00> : vector<2x128xf32>
    %358 = tpu.matmul %357, %201, %cst_54 {dimension_numbers = #tpu.dot_dimension_numbers<[1], [0], [0], [1], [0, 0, 1, 1], [], []>} : vector<2x32xbf16>, vector<32x128xbf16>, vector<2x128xf32> -> vector<2x128xf32>
    %359 = arith.addf %356, %358 : vector<2x128xf32>
    %360 = vector.extract_strided_slice %359 {offsets = [0, 0], sizes = [2, 96], strides = [1, 1]} : vector<2x128xf32> to vector<2x96xf32>
    %361 = arith.negf %360 : vector<2x96xf32>
    %362 = math.exp %361 : vector<2x96xf32>
    %cst_55 = arith.constant 1.000000e+00 : f32
    %363 = vector.broadcast %cst_55 : f32 to vector<2x96xf32>
    %364 = arith.addf %363, %362 : vector<2x96xf32>
    %365 = arith.divf %363, %364 : vector<2x96xf32>
    %366 = vector.extract_strided_slice %365 {offsets = [0, 0], sizes = [2, 32], strides = [1, 1]} : vector<2x96xf32> to vector<2x32xf32>
    %367 = vector.extract_strided_slice %365 {offsets = [0, 32], sizes = [2, 32], strides = [1, 1]} : vector<2x96xf32> to vector<2x32xf32>
    %368 = vector.extract_strided_slice %365 {offsets = [0, 64], sizes = [2, 32], strides = [1, 1]} : vector<2x96xf32> to vector<2x32xf32>
    %369 = vector.extract_strided_slice %359 {offsets = [0, 96], sizes = [2, 32], strides = [1, 1]} : vector<2x128xf32> to vector<2x32xf32>
    %370 = math.tanh %369 : vector<2x32xf32>
    %371 = arith.mulf %367, %348 : vector<2x32xf32>
    %372 = arith.mulf %366, %370 : vector<2x32xf32>
    %373 = arith.addf %371, %372 : vector<2x32xf32>
    %374 = math.tanh %373 : vector<2x32xf32>
    %375 = arith.mulf %368, %374 : vector<2x32xf32>
    %376 = vector.shape_cast %4 : vector<2x1xi1> to vector<2x1xi1>
    %377 = vector.broadcast %376 : vector<2x1xi1> to vector<2x32xi1>
    %378 = arith.select %377, %375, %345 : vector<2x32xi1>, vector<2x32xf32>
    %379 = vector.shape_cast %4 : vector<2x1xi1> to vector<2x1xi1>
    %380 = vector.broadcast %379 : vector<2x1xi1> to vector<2x32xi1>
    %381 = arith.select %380, %373, %348 : vector<2x32xi1>, vector<2x32xf32>
    %cst_56 = arith.constant 0.000000e+00 : f32
    %382 = vector.broadcast %cst_56 : f32 to vector<2x32xf32>
    %383 = vector.shape_cast %4 : vector<2x1xi1> to vector<2x1xi1>
    %384 = vector.broadcast %383 : vector<2x1xi1> to vector<2x32xi1>
    %385 = arith.select %384, %375, %382 : vector<2x32xi1>, vector<2x32xf32>
    %386 = arith.truncf %199 : vector<2x32xf32> to vector<2x32xbf16>
    %cst_57 = arith.constant dense<0.000000e+00> : vector<2x128xf32>
    %387 = tpu.matmul %386, %200, %cst_57 {dimension_numbers = #tpu.dot_dimension_numbers<[1], [0], [0], [1], [0, 0, 1, 1], [], []>} : vector<2x32xbf16>, vector<32x128xbf16>, vector<2x128xf32> -> vector<2x128xf32>
    %388 = vector.broadcast %202 : vector<1x128xf32> to vector<2x128xf32>
    %389 = arith.addf %387, %388 : vector<2x128xf32>
    %390 = arith.truncf %378 : vector<2x32xf32> to vector<2x32xbf16>
    %cst_58 = arith.constant dense<0.000000e+00> : vector<2x128xf32>
    %391 = tpu.matmul %390, %201, %cst_58 {dimension_numbers = #tpu.dot_dimension_numbers<[1], [0], [0], [1], [0, 0, 1, 1], [], []>} : vector<2x32xbf16>, vector<32x128xbf16>, vector<2x128xf32> -> vector<2x128xf32>
    %392 = arith.addf %389, %391 : vector<2x128xf32>
    %393 = vector.extract_strided_slice %392 {offsets = [0, 0], sizes = [2, 96], strides = [1, 1]} : vector<2x128xf32> to vector<2x96xf32>
    %394 = arith.negf %393 : vector<2x96xf32>
    %395 = math.exp %394 : vector<2x96xf32>
    %cst_59 = arith.constant 1.000000e+00 : f32
    %396 = vector.broadcast %cst_59 : f32 to vector<2x96xf32>
    %397 = arith.addf %396, %395 : vector<2x96xf32>
    %398 = arith.divf %396, %397 : vector<2x96xf32>
    %399 = vector.extract_strided_slice %398 {offsets = [0, 0], sizes = [2, 32], strides = [1, 1]} : vector<2x96xf32> to vector<2x32xf32>
    %400 = vector.extract_strided_slice %398 {offsets = [0, 32], sizes = [2, 32], strides = [1, 1]} : vector<2x96xf32> to vector<2x32xf32>
    %401 = vector.extract_strided_slice %398 {offsets = [0, 64], sizes = [2, 32], strides = [1, 1]} : vector<2x96xf32> to vector<2x32xf32>
    %402 = vector.extract_strided_slice %392 {offsets = [0, 96], sizes = [2, 32], strides = [1, 1]} : vector<2x128xf32> to vector<2x32xf32>
    %403 = math.tanh %402 : vector<2x32xf32>
    %404 = arith.mulf %400, %381 : vector<2x32xf32>
    %405 = arith.mulf %399, %403 : vector<2x32xf32>
    %406 = arith.addf %404, %405 : vector<2x32xf32>
    %407 = math.tanh %406 : vector<2x32xf32>
    %408 = arith.mulf %401, %407 : vector<2x32xf32>
    %cst_60 = arith.constant 0.000000e+00 : f32
    %409 = vector.broadcast %cst_60 : f32 to vector<2x32xf32>
    %410 = vector.shape_cast %6 : vector<2x1xi1> to vector<2x1xi1>
    %411 = vector.broadcast %410 : vector<2x1xi1> to vector<2x32xi1>
    %412 = arith.select %411, %408, %409 : vector<2x32xi1>, vector<2x32xf32>
    %413 = tpu.concatenate %227, %250, %273, %296, %319, %352, %385, %412 in 0 : vector<2x32xf32>, vector<2x32xf32>, vector<2x32xf32>, vector<2x32xf32>, vector<2x32xf32>, vector<2x32xf32>, vector<2x32xf32>, vector<2x32xf32> -> vector<16x32xf32>
    %414 = arith.truncf %413 : vector<16x32xf32> to vector<16x32xbf16>
    %c128 = arith.constant 128 : index
    %c0_61 = arith.constant 0 : index
    %415 = vector.load %arg2[%c128, %c0_61] : memref<160x128xbf16, #tpu.memory_space<vmem>>, vector<32x128xbf16>
    %cst_62 = arith.constant dense<0.000000e+00> : vector<16x128xf32>
    %416 = tpu.matmul %414, %415, %cst_62 {dimension_numbers = #tpu.dot_dimension_numbers<[1], [0], [0], [1], [0, 0, 1, 1], [], []>} : vector<16x32xbf16>, vector<32x128xbf16>, vector<16x128xf32> -> vector<16x128xf32>
    %c2 = arith.constant 2 : index
    %c0_63 = arith.constant 0 : index
    %417 = vector.load %arg3[%c2, %c0_63] : memref<3x128xf32, #tpu.memory_space<vmem>>, vector<1x128xf32>
    %418 = vector.broadcast %417 : vector<1x128xf32> to vector<16x128xf32>
    %419 = arith.addf %416, %418 : vector<16x128xf32>
    %420 = vector.extract_strided_slice %419 {offsets = [0, 0], sizes = [16, 2], strides = [1, 1]} : vector<16x128xf32> to vector<16x2xf32>
    %421 = arith.negf %420 : vector<16x2xf32>
    %422 = math.exp %421 : vector<16x2xf32>
    %cst_64 = arith.constant 1.000000e+00 : f32
    %423 = vector.broadcast %cst_64 : f32 to vector<16x2xf32>
    %424 = arith.addf %423, %422 : vector<16x2xf32>
    %425 = arith.divf %423, %424 : vector<16x2xf32>
    %c0_65 = arith.constant 0 : index
    %c0_66 = arith.constant 0 : index
    %426 = vector.load %arg4[%c0_65, %c0_66] : memref<16x2xf32, #tpu.memory_space<vmem>>, vector<16x2xf32>
    tpu.vector_store %arg4[%c0_65, %c0_66], %425 {strides = array<i32>} : memref<16x2xf32, #tpu.memory_space<vmem>>, vector<16x2xf32>,
    return
  }
  func.func @transform_0(%arg0: i32) -> (i32, i32) {
    %c0_i32 = arith.constant 0 : i32
    %c0_i32_0 = arith.constant 0 : i32
    %c0_i32_1 = arith.constant 0 : i32
    return %c0_i32, %c0_i32_0 : i32, i32
  }
  func.func @transform_1(%arg0: i32) -> (i32, i32) {
    %c0_i32 = arith.constant 0 : i32
    %c0_i32_0 = arith.constant 0 : i32
    %c0_i32_1 = arith.constant 0 : i32
    return %c0_i32, %c0_i32_0 : i32, i32
  }
  func.func @transform_2(%arg0: i32) -> (i32, i32) {
    %c0_i32 = arith.constant 0 : i32
    %c0_i32_0 = arith.constant 0 : i32
    %c0_i32_1 = arith.constant 0 : i32
    return %c0_i32, %c0_i32_0 : i32, i32
  }
  func.func @transform_3(%arg0: i32) -> (i32, i32) {
    %c0_i32 = arith.constant 0 : i32
    %c0_i32_0 = arith.constant 0 : i32
    %c0_i32_1 = arith.constant 0 : i32
    return %c0_i32, %c0_i32_0 : i32, i32
  }
}

</mosaic_0001>

<llo_original>
// kernel: tpu_custom_call.1
$region0: #{tpu_custom_call.1}
  #allocation0 [shape = 'u32[]', space=smem, size = 0x4, offset = 0x4, fixed_abs, tag = 'smem constant byte address 0x4 - core index']
  #allocation1 [shape = 'u32[144,128]{1,0:T(1,128)}', space=vmem, size = 0x12000, scoped, tag = 'internal scratch']
  %s0 = inlined_call_operand.hbm [shape: bf16[16,32], index: 0, kind: input, shape index: {}]
  %s1 = inlined_call_operand.hbm [shape: bf16[160,128], index: 1, kind: input, shape index: {}]
  %s2 = inlined_call_operand.vmem [shape: f32[3,128], index: 2, kind: input, shape index: {}]
  %s3 = inlined_call_operand.vmem [shape: f32[16,2], index: 3, kind: output, shape index: {}]
  %s4 = sld [smem:[#allocation0]]
  $region30: #{tpu_custom_call.1} parent=0
    _
  %s6 = ssub.s32 1, %s4
  %s7 = scalar_select 0, %s6, %s4
  $region1: #{tpu_custom_call.1} parent=0
    #allocation2 [shape = 'u8[4096]{0}', space=vmem, size = 0x1000, scoped, tag = 'input window, operand 0, single buffered']
    #allocation3 [shape = 's32[1]{0}', space=sflag, size = 0x4, scoped, tag = 'scoped memory for tpu_custom_call.1']
    #allocation4 [shape = 'u8[40960]{0}', space=vmem, size = 0xa000, scoped, tag = 'input window, operand 1, single buffered']
    #allocation5 [shape = 's32[1]{0}', space=sflag, size = 0x4, scoped, tag = 'scoped memory for tpu_custom_call.1']
    %8 = vsyncpa [#allocation3], 0
    %9 = vsyncpa [#allocation5], 0
    // Predicated region
    $region2: #{tpu_custom_call.1} parent=1 // pred_check
      _
    $region3: #{tpu_custom_call.1} parent=1 // pred_check_branch
      %11 = sbr.rel (0) target = $region5
    $region4: #{tpu_custom_call.1} parent=1 // pred_region
      %s13 = ssub.s32 128, 128
      %14 = vsyncadd [#allocation3], %s13
      %s15 = sshll.u32 [#allocation2], 4
      %s16 = int_to_ptr.vmem [resolvable:$true] %s15
      %21 = dma.hbm_to_vmem [thread:$0]  %s0, 128, %s16, [#allocation3], 64, 64, 4
    $region5: #{tpu_custom_call.1} parent=1 // pred_fallthru
      _
    // Predicated region
    $region6: #{tpu_custom_call.1} parent=1 // pred_check
      _
    $region7: #{tpu_custom_call.1} parent=1 // pred_check_branch
      %23 = sbr.rel (0) target = $region9
    $region8: #{tpu_custom_call.1} parent=1 // pred_region
      %s25 = ssub.s32 1280, 1280
      %26 = vsyncadd [#allocation5], %s25
      %s27 = sshll.u32 [#allocation4], 4
      %s28 = int_to_ptr.vmem [resolvable:$true] %s27
      %33 = dma.hbm_to_vmem [thread:$0]  %s1, 1280, %s28, [#allocation5], 64, 64, 4
    $region9: #{tpu_custom_call.1} parent=1 // pred_fallthru
      _
    // Predicated region
    $region10: #{tpu_custom_call.1} parent=1 // pred_check
      _
    $region11: #{tpu_custom_call.1} parent=1 // pred_check_branch
      %35 = sbr.rel (0) target = $region13
    $region12: #{tpu_custom_call.1} parent=1 // pred_region
      _
    $region13: #{tpu_custom_call.1} parent=1 // pred_fallthru
      _
    // Predicated region
    $region14: #{tpu_custom_call.1} parent=1 // pred_check
      _
    $region15: #{tpu_custom_call.1} parent=1 // pred_check_branch
      %37 = sbr.rel (0) target = $region17
    $region16: #{tpu_custom_call.1} parent=1 // pred_region
      %38 = dma.done [#allocation3], 128
    $region17: #{tpu_custom_call.1} parent=1 // pred_fallthru
      _
    // Predicated region
    $region18: #{tpu_custom_call.1} parent=1 // pred_check
      _
    $region19: #{tpu_custom_call.1} parent=1 // pred_check_branch
      %40 = sbr.rel (0) target = $region21
    $region20: #{tpu_custom_call.1} parent=1 // pred_region
      %41 = dma.done [#allocation5], 1280
    $region21: #{tpu_custom_call.1} parent=1 // pred_fallthru
      _
    %v43 = vlaneseq
    %v44 = vshrl.u32 %v43, 7
    %vm45 = vcmp.lt.s32.totalorder %v44, 1
    %v46 = vld [vmem:[#allocation2] sm:$0xf]
    %v47 = vld [vmem:[#allocation2 + $0x4] sm:$0xf]
    %v48 = vld [vmem:[#allocation4] sm:$0xf]
    %v49 = vld [vmem:[#allocation4 + $0x4] sm:$0xf]
    %v50 = vld [vmem:[#allocation4 + $0x8] sm:$0xf]
    %v51 = vld [vmem:[#allocation4 + $0xc] sm:$0xf]
    %v52 = vld [vmem:[%s2] sm:$0x1]
    %v53 = vlaneseq
    %v54 = vshrl.u32 %v53, 7
    %v55 = vsub.s32 0, %v54
    %v56 = vrot.slane %v52, %v55
    %v59 = vunpack.c.l.b16 %v46
    %v60 = vunpack.c.l.b16 %v47
    %v61 = vpack.c.b16 %v60, %v59
    %v66 = vunpack.c.l.b16 %v48
    %v67 = vunpack.c.l.b16 %v49
    %v68 = vunpack.c.l.b16 %v50
    %v69 = vunpack.c.l.b16 %v51
    %v70 = vpack.c.b16 %v67, %v66
    %v71 = vpack.c.b16 %v69, %v68
    %vm74 = vcmask 261120
    %v76 = vsel %vm74, %v61, 0
    %78 = vmatprep.subr.bf16.mxu0 0
    %79 = vmatpush1.bf16.msra.mxu0 %v70
    %80 = vmatprep.subr.bf16.mxu0 0
    %81 = vmatpush1.bf16.msra.mxu0 %v71
    %82 = vmatprep.subr.bf16.mxu0 0
    %83 = vmatpush1.bf16.msra.mxu0 0
    %84 = vmatprep.subr.bf16.mxu0 0
    %85 = vmatpush1.bf16.msra.mxu0 0
    %86 = vmatprep.subr.bf16.mxu0 0
    %87 = vmatpush1.bf16.msra.mxu0 0
    %88 = vmatprep.subr.bf16.mxu0 0
    %89 = vmatpush1.bf16.msra.mxu0 0
    %90 = vmatprep.subr.bf16.mxu0 0
    %91 = vmatpush1.bf16.msra.mxu0 0
    %92 = vmatprep.subr.bf16.mxu0 0
    %93 = vmatpush1.bf16.msra.mxu0 0
    %94 = vmatprep.subr.bf16.mxu0 0
    %95 = vmatpush1.bf16.msra.mxu0 0
    %96 = vmatprep.subr.bf16.mxu0 0
    %97 = vmatpush1.bf16.msra.mxu0 0
    %98 = vmatprep.subr.bf16.mxu0 0
    %99 = vmatpush1.bf16.msra.mxu0 0
    %100 = vmatprep.subr.bf16.mxu0 0
    %101 = vmatpush1.bf16.msra.mxu0 0
    %102 = vmatprep.subr.bf16.mxu0 0
    %103 = vmatpush1.bf16.msra.mxu0 0
    %104 = vmatprep.subr.bf16.mxu0 0
    %105 = vmatpush1.bf16.msra.mxu0 0
    %106 = vmatprep.subr.bf16.mxu0 0
    %107 = vmatpush1.bf16.msra.mxu0 0
    %108 = vmatprep.subr.bf16.mxu0 0
    %109 = vmatpush1.bf16.msra.mxu0 0
    %110 = vmatprep.mubr.bf16.mxu0 0
    %111 = vmatmul.mubr.bf16.gmra.mrb[0].mxu0 %v76
    %v112 = vpop.f32.mrb[0].mxu0
    %v113 = vadd.f32 %v56, %v112
    %v114 = vpop.f32.mrb[0].mxu0
    %v115 = vpop.f32.mrb[0].mxu0
    %v116 = vadd.f32 %v56, %v115
    %v117 = vpop.f32.mrb[0].mxu0
    %118 = vdwg.mxu0
    %v119 = vld [vmem:[#allocation4 + $0x10] sm:$0xf]
    %v120 = vld [vmem:[#allocation4 + $0x14] sm:$0xf]
    %v121 = vld [vmem:[#allocation4 + $0x18] sm:$0xf]
    %v122 = vld [vmem:[#allocation4 + $0x1c] sm:$0xf]
    %v127 = vunpack.c.l.b16 %v119
    %v128 = vunpack.c.l.b16 %v120
    %v129 = vunpack.c.l.b16 %v121
    %v130 = vunpack.c.l.b16 %v122
    %v131 = vpack.c.b16 %v128, %v127
    %v132 = vpack.c.b16 %v130, %v129
    %v136 = vsel %vm74, 0, 0
    %138 = vmatprep.subr.bf16.mxu0 0
    %139 = vmatpush1.bf16.msra.mxu0 %v131
    %140 = vmatprep.subr.bf16.mxu0 0
    %141 = vmatpush1.bf16.msra.mxu0 %v132
    %142 = vmatprep.subr.bf16.mxu0 0
    %143 = vmatpush1.bf16.msra.mxu0 0
    %144 = vmatprep.subr.bf16.mxu0 0
    %145 = vmatpush1.bf16.msra.mxu0 0
    %146 = vmatprep.subr.bf16.mxu0 0
    %147 = vmatpush1.bf16.msra.mxu0 0
    %148 = vmatprep.subr.bf16.mxu0 0
    %149 = vmatpush1.bf16.msra.mxu0 0
    %150 = vmatprep.subr.bf16.mxu0 0
    %151 = vmatpush1.bf16.msra.mxu0 0
    %152 = vmatprep.subr.bf16.mxu0 0
    %153 = vmatpush1.bf16.msra.mxu0 0
    %154 = vmatprep.subr.bf16.mxu0 0
    %155 = vmatpush1.bf16.msra.mxu0 0
    %156 = vmatprep.subr.bf16.mxu0 0
    %157 = vmatpush1.bf16.msra.mxu0 0
    %158 = vmatprep.subr.bf16.mxu0 0
    %159 = vmatpush1.bf16.msra.mxu0 0
    %160 = vmatprep.subr.bf16.mxu0 0
    %161 = vmatpush1.bf16.msra.mxu0 0
    %162 = vmatprep.subr.bf16.mxu0 0
    %163 = vmatpush1.bf16.msra.mxu0 0
    %164 = vmatprep.subr.bf16.mxu0 0
    %165 = vmatpush1.bf16.msra.mxu0 0
    %166 = vmatprep.subr.bf16.mxu0 0
    %167 = vmatpush1.bf16.msra.mxu0 0
    %168 = vmatprep.subr.bf16.mxu0 0
    %169 = vmatpush1.bf16.msra.mxu0 0
    %170 = vmatprep.mubr.bf16.mxu0 0
    %171 = vmatmul.mubr.bf16.gmra.mrb[0].mxu0 %v136
    %v172 = vpop.f32.mrb[0].mxu0
    %v173 = vadd.f32 0.0, %v172
    %v174 = vpop.f32.mrb[0].mxu0
    %v175 = vpop.f32.mrb[0].mxu0
    %v176 = vpop.f32.mrb[0].mxu0
    %177 = vdwg.mxu0
    %v178 = vadd.f32 %v113, %v173
    %v179 = vxor.u32 %v178, 2147483648
    %v180 = vmul.f32 %v179, 1.442695
    %v181 = vpow.pop %v180
    %v182 = vadd.f32 %v181, 1.0
    %v183 = vrcp.pop %v182
    %v184 = vmul.f32 1.0, %v183
    %v185 = vtanh.pop %v178
    %v186 = vmul.f32 %v184, 0.0
    %188 = vrot.lane.b32.xlu0 %v185, 32
    %v189 = vpop.permute.xlu0 %188
    %v191 = vmul.f32 %v184, %v189
    %193 = vrot.lane.b32.xlu0 %v191, 32
    %v194 = vpop.permute.xlu0 %193
    %v196 = vadd.f32 %v186, %v194
    %v197 = vtanh.pop %v196
    %199 = vrot.lane.b32.xlu0 %v197, 32
    %v200 = vpop.permute.xlu0 %199
    %v202 = vmul.f32 %v184, %v200
    %v203 = vpack.c.bf16 %v202, %v202
    %205 = vrot.lane.b32.xlu0 %v203, 64
    %v206 = vpop.permute.xlu0 %205
    %v208 = vsel %vm74, %v206, 0
    %210 = vmatprep.subr.bf16.mxu0 0
    %211 = vmatpush1.bf16.msra.mxu0 %v131
    %212 = vmatprep.subr.bf16.mxu0 0
    %213 = vmatpush1.bf16.msra.mxu0 %v132
    %214 = vmatprep.subr.bf16.mxu0 0
    %215 = vmatpush1.bf16.msra.mxu0 0
    %216 = vmatprep.subr.bf16.mxu0 0
    %217 = vmatpush1.bf16.msra.mxu0 0
    %218 = vmatprep.subr.bf16.mxu0 0
    %219 = vmatpush1.bf16.msra.mxu0 0
    %220 = vmatprep.subr.bf16.mxu0 0
    %221 = vmatpush1.bf16.msra.mxu0 0
    %222 = vmatprep.subr.bf16.mxu0 0
    %223 = vmatpush1.bf16.msra.mxu0 0
    %224 = vmatprep.subr.bf16.mxu0 0
    %225 = vmatpush1.bf16.msra.mxu0 0
    %226 = vmatprep.subr.bf16.mxu0 0
    %227 = vmatpush1.bf16.msra.mxu0 0
    %228 = vmatprep.subr.bf16.mxu0 0
    %229 = vmatpush1.bf16.msra.mxu0 0
    %230 = vmatprep.subr.bf16.mxu0 0
    %231 = vmatpush1.bf16.msra.mxu0 0
    %232 = vmatprep.subr.bf16.mxu0 0
    %233 = vmatpush1.bf16.msra.mxu0 0
    %234 = vmatprep.subr.bf16.mxu0 0
    %235 = vmatpush1.bf16.msra.mxu0 0
    %236 = vmatprep.subr.bf16.mxu0 0
    %237 = vmatpush1.bf16.msra.mxu0 0
    %238 = vmatprep.subr.bf16.mxu0 0
    %239 = vmatpush1.bf16.msra.mxu0 0
    %240 = vmatprep.subr.bf16.mxu0 0
    %241 = vmatpush1.bf16.msra.mxu0 0
    %242 = vmatprep.mubr.bf16.mxu0 0
    %243 = vmatmul.mubr.bf16.gmra.mrb[0].mxu0 %v208
    %v244 = vpop.f32.mrb[0].mxu0
    %v245 = vadd.f32 0.0, %v244
    %v246 = vpop.f32.mrb[0].mxu0
    %v247 = vpop.f32.mrb[0].mxu0
    %v248 = vpop.f32.mrb[0].mxu0
    %249 = vdwg.mxu0
    %v251 = vrot.slane %v245, 6
    %v253 = vadd.f32 %v113, %v251
    %v254 = vxor.u32 %v253, 2147483648
    %v255 = vmul.f32 %v254, 1.442695
    %v256 = vpow.pop %v255
    %v257 = vadd.f32 %v256, 1.0
    %v258 = vrcp.pop %v257
    %v259 = vmul.f32 1.0, %v258
    %v260 = vtanh.pop %v253
    %v262 = vrot.slane %v196, 6
    %v264 = vmul.f32 %v259, %v262
    %266 = vrot.lane.b32.xlu0 %v260, 32
    %v267 = vpop.permute.xlu0 %266
    %v269 = vmul.f32 %v259, %v267
    %271 = vrot.lane.b32.xlu0 %v269, 32
    %v272 = vpop.permute.xlu0 %271
    %v274 = vadd.f32 %v264, %v272
    %v275 = vtanh.pop %v274
    %277 = vrot.lane.b32.xlu0 %v275, 32
    %v278 = vpop.permute.xlu0 %277
    %v280 = vmul.f32 %v259, %v278
    %v281 = vpack.c.bf16 %v280, %v280
    %v283 = vrot.slane %v281, 1
    %284 = vrot.lane.b32.xlu0 %v283, 64
    %v285 = vpop.permute.xlu0 %284
    %v287 = vsel %vm74, %v285, 0
    %289 = vmatprep.subr.bf16.mxu0 0
    %290 = vmatpush1.bf16.msra.mxu0 %v131
    %291 = vmatprep.subr.bf16.mxu0 0
    %292 = vmatpush1.bf16.msra.mxu0 %v132
    %293 = vmatprep.subr.bf16.mxu0 0
    %294 = vmatpush1.bf16.msra.mxu0 0
    %295 = vmatprep.subr.bf16.mxu0 0
    %296 = vmatpush1.bf16.msra.mxu0 0
    %297 = vmatprep.subr.bf16.mxu0 0
    %298 = vmatpush1.bf16.msra.mxu0 0
    %299 = vmatprep.subr.bf16.mxu0 0
    %300 = vmatpush1.bf16.msra.mxu0 0
    %301 = vmatprep.subr.bf16.mxu0 0
    %302 = vmatpush1.bf16.msra.mxu0 0
    %303 = vmatprep.subr.bf16.mxu0 0
    %304 = vmatpush1.bf16.msra.mxu0 0
    %305 = vmatprep.subr.bf16.mxu0 0
    %306 = vmatpush1.bf16.msra.mxu0 0
    %307 = vmatprep.subr.bf16.mxu0 0
    %308 = vmatpush1.bf16.msra.mxu0 0
    %309 = vmatprep.subr.bf16.mxu0 0
    %310 = vmatpush1.bf16.msra.mxu0 0
    %311 = vmatprep.subr.bf16.mxu0 0
    %312 = vmatpush1.bf16.msra.mxu0 0
    %313 = vmatprep.subr.bf16.mxu0 0
    %314 = vmatpush1.bf16.msra.mxu0 0
    %315 = vmatprep.subr.bf16.mxu0 0
    %316 = vmatpush1.bf16.msra.mxu0 0
    %317 = vmatprep.subr.bf16.mxu0 0
    %318 = vmatpush1.bf16.msra.mxu0 0
    %319 = vmatprep.subr.bf16.mxu0 0
    %320 = vmatpush1.bf16.msra.mxu0 0
    %321 = vmatprep.mubr.bf16.mxu0 0
    %322 = vmatmul.mubr.bf16.gmra.mrb[0].mxu0 %v287
    %v323 = vpop.f32.mrb[0].mxu0
    %v324 = vadd.f32 0.0, %v323
    %v325 = vpop.f32.mrb[0].mxu0
    %v326 = vpop.f32.mrb[0].mxu0
    %v327 = vpop.f32.mrb[0].mxu0
    %328 = vdwg.mxu0
    %v330 = vrot.slane %v324, 4
    %v332 = vadd.f32 %v113, %v330
    %v333 = vxor.u32 %v332, 2147483648
    %v334 = vmul.f32 %v333, 1.442695
    %v335 = vpow.pop %v334
    %v336 = vadd.f32 %v335, 1.0
    %v337 = vrcp.pop %v336
    %v338 = vmul.f32 1.0, %v337
    %v339 = vtanh.pop %v332
    %v341 = vrot.slane %v274, 6
    %v343 = vmul.f32 %v338, %v341
    %345 = vrot.lane.b32.xlu0 %v339, 32
    %v346 = vpop.permute.xlu0 %345
    %v348 = vmul.f32 %v338, %v346
    %350 = vrot.lane.b32.xlu0 %v348, 32
    %v351 = vpop.permute.xlu0 %350
    %v353 = vadd.f32 %v343, %v351
    %v354 = vtanh.pop %v353
    %356 = vrot.lane.b32.xlu0 %v354, 32
    %v357 = vpop.permute.xlu0 %356
    %v359 = vmul.f32 %v338, %v357
    %v360 = vpack.c.bf16 %v359, %v359
    %v362 = vrot.slane %v360, 2
    %363 = vrot.lane.b32.xlu0 %v362, 64
    %v364 = vpop.permute.xlu0 %363
    %v366 = vsel %vm74, %v364, 0
    %368 = vmatprep.subr.bf16.mxu0 0
    %369 = vmatpush1.bf16.msra.mxu0 %v131
    %370 = vmatprep.subr.bf16.mxu0 0
    %371 = vmatpush1.bf16.msra.mxu0 %v132
    %372 = vmatprep.subr.bf16.mxu0 0
    %373 = vmatpush1.bf16.msra.mxu0 0
    %374 = vmatprep.subr.bf16.mxu0 0
    %375 = vmatpush1.bf16.msra.mxu0 0
    %376 = vmatprep.subr.bf16.mxu0 0
    %377 = vmatpush1.bf16.msra.mxu0 0
    %378 = vmatprep.subr.bf16.mxu0 0
    %379 = vmatpush1.bf16.msra.mxu0 0
    %380 = vmatprep.subr.bf16.mxu0 0
    %381 = vmatpush1.bf16.msra.mxu0 0
    %382 = vmatprep.subr.bf16.mxu0 0
    %383 = vmatpush1.bf16.msra.mxu0 0
    %384 = vmatprep.subr.bf16.mxu0 0
    %385 = vmatpush1.bf16.msra.mxu0 0
    %386 = vmatprep.subr.bf16.mxu0 0
    %387 = vmatpush1.bf16.msra.mxu0 0
    %388 = vmatprep.subr.bf16.mxu0 0
    %389 = vmatpush1.bf16.msra.mxu0 0
    %390 = vmatprep.subr.bf16.mxu0 0
    %391 = vmatpush1.bf16.msra.mxu0 0
    %392 = vmatprep.subr.bf16.mxu0 0
    %393 = vmatpush1.bf16.msra.mxu0 0
    %394 = vmatprep.subr.bf16.mxu0 0
    %395 = vmatpush1.bf16.msra.mxu0 0
    %396 = vmatprep.subr.bf16.mxu0 0
    %397 = vmatpush1.bf16.msra.mxu0 0
    %398 = vmatprep.subr.bf16.mxu0 0
    %399 = vmatpush1.bf16.msra.mxu0 0
    %400 = vmatprep.mubr.bf16.mxu0 0
    %401 = vmatmul.mubr.bf16.gmra.mrb[0].mxu0 %v366
    %v402 = vpop.f32.mrb[0].mxu0
    %v403 = vadd.f32 0.0, %v402
    %v404 = vpop.f32.mrb[0].mxu0
    %v405 = vpop.f32.mrb[0].mxu0
    %v406 = vpop.f32.mrb[0].mxu0
    %407 = vdwg.mxu0
    %v409 = vrot.slane %v403, 2
    %v411 = vadd.f32 %v113, %v409
    %v412 = vxor.u32 %v411, 2147483648
    %v413 = vmul.f32 %v412, 1.442695
    %v414 = vpow.pop %v413
    %v415 = vadd.f32 %v414, 1.0
    %v416 = vrcp.pop %v415
    %v417 = vmul.f32 1.0, %v416
    %v418 = vtanh.pop %v411
    %v420 = vrot.slane %v353, 6
    %v422 = vmul.f32 %v417, %v420
    %424 = vrot.lane.b32.xlu0 %v418, 32
    %v425 = vpop.permute.xlu0 %424
    %v427 = vmul.f32 %v417, %v425
    %429 = vrot.lane.b32.xlu0 %v427, 32
    %v430 = vpop.permute.xlu0 %429
    %v432 = vadd.f32 %v422, %v430
    %v433 = vtanh.pop %v432
    %435 = vrot.lane.b32.xlu0 %v433, 32
    %v436 = vpop.permute.xlu0 %435
    %v438 = vmul.f32 %v417, %v436
    %v439 = vpack.c.bf16 %v438, %v438
    %v441 = vrot.slane %v439, 3
    %442 = vrot.lane.b32.xlu0 %v441, 64
    %v443 = vpop.permute.xlu0 %442
    %v445 = vsel %vm74, %v443, 0
    %447 = vmatprep.subr.bf16.mxu0 0
    %448 = vmatpush1.bf16.msra.mxu0 %v131
    %449 = vmatprep.subr.bf16.mxu0 0
    %450 = vmatpush1.bf16.msra.mxu0 %v132
    %451 = vmatprep.subr.bf16.mxu0 0
    %452 = vmatpush1.bf16.msra.mxu0 0
    %453 = vmatprep.subr.bf16.mxu0 0
    %454 = vmatpush1.bf16.msra.mxu0 0
    %455 = vmatprep.subr.bf16.mxu0 0
    %456 = vmatpush1.bf16.msra.mxu0 0
    %457 = vmatprep.subr.bf16.mxu0 0
    %458 = vmatpush1.bf16.msra.mxu0 0
    %459 = vmatprep.subr.bf16.mxu0 0
    %460 = vmatpush1.bf16.msra.mxu0 0
    %461 = vmatprep.subr.bf16.mxu0 0
    %462 = vmatpush1.bf16.msra.mxu0 0
    %463 = vmatprep.subr.bf16.mxu0 0
    %464 = vmatpush1.bf16.msra.mxu0 0
    %465 = vmatprep.subr.bf16.mxu0 0
    %466 = vmatpush1.bf16.msra.mxu0 0
    %467 = vmatprep.subr.bf16.mxu0 0
    %468 = vmatpush1.bf16.msra.mxu0 0
    %469 = vmatprep.subr.bf16.mxu0 0
    %470 = vmatpush1.bf16.msra.mxu0 0
    %471 = vmatprep.subr.bf16.mxu0 0
    %472 = vmatpush1.bf16.msra.mxu0 0
    %473 = vmatprep.subr.bf16.mxu0 0
    %474 = vmatpush1.bf16.msra.mxu0 0
    %475 = vmatprep.subr.bf16.mxu0 0
    %476 = vmatpush1.bf16.msra.mxu0 0
    %477 = vmatprep.subr.bf16.mxu0 0
    %478 = vmatpush1.bf16.msra.mxu0 0
    %479 = vmatprep.mubr.bf16.mxu0 0
    %480 = vmatmul.mubr.bf16.gmra.mrb[0].mxu0 %v445
    %v481 = vpop.f32.mrb[0].mxu0
    %v482 = vadd.f32 0.0, %v481
    %v483 = vpop.f32.mrb[0].mxu0
    %v484 = vpop.f32.mrb[0].mxu0
    %v485 = vpop.f32.mrb[0].mxu0
    %486 = vdwg.mxu0
    %v487 = vadd.f32 %v116, %v482
    %v488 = vxor.u32 %v487, 2147483648
    %v489 = vmul.f32 %v488, 1.442695
    %v490 = vpow.pop %v489
    %v491 = vadd.f32 %v490, 1.0
    %v492 = vrcp.pop %v491
    %v493 = vmul.f32 1.0, %v492
    %v494 = vtanh.pop %v487
    %v496 = vrot.slane %v432, 6
    %v498 = vmul.f32 %v493, %v496
    %500 = vrot.lane.b32.xlu0 %v494, 32
    %v501 = vpop.permute.xlu0 %500
    %v503 = vmul.f32 %v493, %v501
    %505 = vrot.lane.b32.xlu0 %v503, 32
    %v506 = vpop.permute.xlu0 %505
    %v508 = vadd.f32 %v498, %v506
    %v509 = vtanh.pop %v508
    %511 = vrot.lane.b32.xlu0 %v509, 32
    %v512 = vpop.permute.xlu0 %511
    %v514 = vmul.f32 %v493, %v512
    %v515 = vpack.c.bf16 %v514, %v514
    %517 = vrot.lane.b32.xlu0 %v515, 64
    %v518 = vpop.permute.xlu0 %517
    %v520 = vsel %vm74, %v518, 0
    %522 = vmatprep.subr.bf16.mxu0 0
    %523 = vmatpush1.bf16.msra.mxu0 %v131
    %524 = vmatprep.subr.bf16.mxu0 0
    %525 = vmatpush1.bf16.msra.mxu0 %v132
    %526 = vmatprep.subr.bf16.mxu0 0
    %527 = vmatpush1.bf16.msra.mxu0 0
    %528 = vmatprep.subr.bf16.mxu0 0
    %529 = vmatpush1.bf16.msra.mxu0 0
    %530 = vmatprep.subr.bf16.mxu0 0
    %531 = vmatpush1.bf16.msra.mxu0 0
    %532 = vmatprep.subr.bf16.mxu0 0
    %533 = vmatpush1.bf16.msra.mxu0 0
    %534 = vmatprep.subr.bf16.mxu0 0
    %535 = vmatpush1.bf16.msra.mxu0 0
    %536 = vmatprep.subr.bf16.mxu0 0
    %537 = vmatpush1.bf16.msra.mxu0 0
    %538 = vmatprep.subr.bf16.mxu0 0
    %539 = vmatpush1.bf16.msra.mxu0 0
    %540 = vmatprep.subr.bf16.mxu0 0
    %541 = vmatpush1.bf16.msra.mxu0 0
    %542 = vmatprep.subr.bf16.mxu0 0
    %543 = vmatpush1.bf16.msra.mxu0 0
    %544 = vmatprep.subr.bf16.mxu0 0
    %545 = vmatpush1.bf16.msra.mxu0 0
    %546 = vmatprep.subr.bf16.mxu0 0
    %547 = vmatpush1.bf16.msra.mxu0 0
    %548 = vmatprep.subr.bf16.mxu0 0
    %549 = vmatpush1.bf16.msra.mxu0 0
    %550 = vmatprep.subr.bf16.mxu0 0
    %551 = vmatpush1.bf16.msra.mxu0 0
    %552 = vmatprep.subr.bf16.mxu0 0
    %553 = vmatpush1.bf16.msra.mxu0 0
    %554 = vmatprep.mubr.bf16.mxu0 0
    %555 = vmatmul.mubr.bf16.gmra.mrb[0].mxu0 %v520
    %v556 = vpop.f32.mrb[0].mxu0
    %v557 = vadd.f32 0.0, %v556
    %v558 = vpop.f32.mrb[0].mxu0
    %v559 = vpop.f32.mrb[0].mxu0
    %v560 = vpop.f32.mrb[0].mxu0
    %561 = vdwg.mxu0
    %v563 = vrot.slane %v557, 6
    %v565 = vadd.f32 %v116, %v563
    %v566 = vxor.u32 %v565, 2147483648
    %v567 = vmul.f32 %v566, 1.442695
    %v568 = vpow.pop %v567
    %v569 = vadd.f32 %v568, 1.0
    %v570 = vrcp.pop %v569
    %v571 = vmul.f32 1.0, %v570
    %v572 = vtanh.pop %v565
    %v574 = vrot.slane %v508, 6
    %v576 = vmul.f32 %v571, %v574
    %578 = vrot.lane.b32.xlu0 %v572, 32
    %v579 = vpop.permute.xlu0 %578
    %v581 = vmul.f32 %v571, %v579
    %583 = vrot.lane.b32.xlu0 %v581, 32
    %v584 = vpop.permute.xlu0 %583
    %v586 = vadd.f32 %v576, %v584
    %v587 = vtanh.pop %v586
    %589 = vrot.lane.b32.xlu0 %v587, 32
    %v590 = vpop.permute.xlu0 %589
    %v592 = vmul.f32 %v571, %v590
    %v593 = vsel %vm45, 1, 0
    %vm594 = vcmp.eq.s32.totalorder %v593, 1
    %v596 = vrot.slane %v592, 2
    %597 = vrot.lane.b32.xlu0 %v596, 64
    %v598 = vpop.permute.xlu0 %597
    %601 = vrot.lane.b32.xlu0 %v514, 64
    %v602 = vpop.permute.xlu0 %601
    %v604 = vsel %vm594, %v598, %v602
    %v606 = vrot.slane %v586, 2
    %607 = vrot.lane.b32.xlu0 %v606, 96
    %v608 = vpop.permute.xlu0 %607
    %610 = vrot.lane.b32.xlu0 %v508, 96
    %v611 = vpop.permute.xlu0 %610
    %v613 = vsel %vm594, %v608, %v611
    %v614 = vsel %vm594, %v598, 0.0
    %v615 = vpack.c.bf16 %v604, %v604
    %v617 = vsel %vm74, %v615, 0
    %619 = vmatprep.subr.bf16.mxu0 0
    %620 = vmatpush1.bf16.msra.mxu0 %v131
    %621 = vmatprep.subr.bf16.mxu0 0
    %622 = vmatpush1.bf16.msra.mxu0 %v132
    %623 = vmatprep.subr.bf16.mxu0 0
    %624 = vmatpush1.bf16.msra.mxu0 0
    %625 = vmatprep.subr.bf16.mxu0 0
    %626 = vmatpush1.bf16.msra.mxu0 0
    %627 = vmatprep.subr.bf16.mxu0 0
    %628 = vmatpush1.bf16.msra.mxu0 0
    %629 = vmatprep.subr.bf16.mxu0 0
    %630 = vmatpush1.bf16.msra.mxu0 0
    %631 = vmatprep.subr.bf16.mxu0 0
    %632 = vmatpush1.bf16.msra.mxu0 0
    %633 = vmatprep.subr.bf16.mxu0 0
    %634 = vmatpush1.bf16.msra.mxu0 0
    %635 = vmatprep.subr.bf16.mxu0 0
    %636 = vmatpush1.bf16.msra.mxu0 0
    %637 = vmatprep.subr.bf16.mxu0 0
    %638 = vmatpush1.bf16.msra.mxu0 0
    %639 = vmatprep.subr.bf16.mxu0 0
    %640 = vmatpush1.bf16.msra.mxu0 0
    %641 = vmatprep.subr.bf16.mxu0 0
    %642 = vmatpush1.bf16.msra.mxu0 0
    %643 = vmatprep.subr.bf16.mxu0 0
    %644 = vmatpush1.bf16.msra.mxu0 0
    %645 = vmatprep.subr.bf16.mxu0 0
    %646 = vmatpush1.bf16.msra.mxu0 0
    %647 = vmatprep.subr.bf16.mxu0 0
    %648 = vmatpush1.bf16.msra.mxu0 0
    %649 = vmatprep.subr.bf16.mxu0 0
    %650 = vmatpush1.bf16.msra.mxu0 0
    %651 = vmatprep.mubr.bf16.mxu0 0
    %652 = vmatmul.mubr.bf16.gmra.mrb[0].mxu0 %v617
    %v653 = vpop.f32.mrb[0].mxu0
    %v654 = vadd.f32 0.0, %v653
    %v655 = vpop.f32.mrb[0].mxu0
    %v656 = vpop.f32.mrb[0].mxu0
    %v657 = vpop.f32.mrb[0].mxu0
    %658 = vdwg.mxu0
    %v660 = vrot.slane %v654, 4
    %v662 = vadd.f32 %v116, %v660
    %v663 = vxor.u32 %v662, 2147483648
    %v664 = vmul.f32 %v663, 1.442695
    %v665 = vpow.pop %v664
    %v666 = vadd.f32 %v665, 1.0
    %v667 = vrcp.pop %v666
    %v668 = vmul.f32 1.0, %v667
    %v669 = vtanh.pop %v662
    %v671 = vrot.slane %v613, 4
    %672 = vrot.lane.b32.xlu0 %v671, 32
    %v673 = vpop.permute.xlu0 %672
    %v675 = vmul.f32 %v668, %v673
    %677 = vrot.lane.b32.xlu0 %v669, 32
    %v678 = vpop.permute.xlu0 %677
    %v680 = vmul.f32 %v668, %v678
    %682 = vrot.lane.b32.xlu0 %v680, 32
    %v683 = vpop.permute.xlu0 %682
    %v685 = vadd.f32 %v675, %v683
    %v686 = vtanh.pop %v685
    %688 = vrot.lane.b32.xlu0 %v686, 32
    %v689 = vpop.permute.xlu0 %688
    %v691 = vmul.f32 %v668, %v689
    %v693 = vrot.slane %v691, 4
    %694 = vrot.lane.b32.xlu0 %v693, 64
    %v695 = vpop.permute.xlu0 %694
    %v697 = vsel %vm594, %v695, %v602
    %v699 = vrot.slane %v685, 4
    %700 = vrot.lane.b32.xlu0 %v699, 96
    %v701 = vpop.permute.xlu0 %700
    %v703 = vsel %vm594, %v701, %v611
    %v704 = vsel %vm594, %v695, 0.0
    %v705 = vpack.c.bf16 %v697, %v697
    %v707 = vsel %vm74, %v705, 0
    %709 = vmatprep.subr.bf16.mxu0 0
    %710 = vmatpush1.bf16.msra.mxu0 %v131
    %711 = vmatprep.subr.bf16.mxu0 0
    %712 = vmatpush1.bf16.msra.mxu0 %v132
    %713 = vmatprep.subr.bf16.mxu0 0
    %714 = vmatpush1.bf16.msra.mxu0 0
    %715 = vmatprep.subr.bf16.mxu0 0
    %716 = vmatpush1.bf16.msra.mxu0 0
    %717 = vmatprep.subr.bf16.mxu0 0
    %718 = vmatpush1.bf16.msra.mxu0 0
    %719 = vmatprep.subr.bf16.mxu0 0
    %720 = vmatpush1.bf16.msra.mxu0 0
    %721 = vmatprep.subr.bf16.mxu0 0
    %722 = vmatpush1.bf16.msra.mxu0 0
    %723 = vmatprep.subr.bf16.mxu0 0
    %724 = vmatpush1.bf16.msra.mxu0 0
    %725 = vmatprep.subr.bf16.mxu0 0
    %726 = vmatpush1.bf16.msra.mxu0 0
    %727 = vmatprep.subr.bf16.mxu0 0
    %728 = vmatpush1.bf16.msra.mxu0 0
    %729 = vmatprep.subr.bf16.mxu0 0
    %730 = vmatpush1.bf16.msra.mxu0 0
    %731 = vmatprep.subr.bf16.mxu0 0
    %732 = vmatpush1.bf16.msra.mxu0 0
    %733 = vmatprep.subr.bf16.mxu0 0
    %734 = vmatpush1.bf16.msra.mxu0 0
    %735 = vmatprep.subr.bf16.mxu0 0
    %736 = vmatpush1.bf16.msra.mxu0 0
    %737 = vmatprep.subr.bf16.mxu0 0
    %738 = vmatpush1.bf16.msra.mxu0 0
    %739 = vmatprep.subr.bf16.mxu0 0
    %740 = vmatpush1.bf16.msra.mxu0 0
    %741 = vmatprep.mubr.bf16.mxu0 0
    %742 = vmatmul.mubr.bf16.gmra.mrb[0].mxu0 %v707
    %v743 = vpop.f32.mrb[0].mxu0
    %v744 = vadd.f32 0.0, %v743
    %v745 = vpop.f32.mrb[0].mxu0
    %v746 = vpop.f32.mrb[0].mxu0
    %v747 = vpop.f32.mrb[0].mxu0
    %748 = vdwg.mxu0
    %v750 = vrot.slane %v744, 2
    %v752 = vadd.f32 %v116, %v750
    %v753 = vxor.u32 %v752, 2147483648
    %v754 = vmul.f32 %v753, 1.442695
    %v755 = vpow.pop %v754
    %v756 = vadd.f32 %v755, 1.0
    %v757 = vrcp.pop %v756
    %v758 = vmul.f32 1.0, %v757
    %v759 = vtanh.pop %v752
    %v761 = vrot.slane %v703, 2
    %762 = vrot.lane.b32.xlu0 %v761, 32
    %v763 = vpop.permute.xlu0 %762
    %v765 = vmul.f32 %v758, %v763
    %767 = vrot.lane.b32.xlu0 %v759, 32
    %v768 = vpop.permute.xlu0 %767
    %v770 = vmul.f32 %v758, %v768
    %772 = vrot.lane.b32.xlu0 %v770, 32
    %v773 = vpop.permute.xlu0 %772
    %v775 = vadd.f32 %v765, %v773
    %v776 = vtanh.pop %v775
    %778 = vrot.lane.b32.xlu0 %v776, 32
    %v779 = vpop.permute.xlu0 %778
    %v781 = vmul.f32 %v758, %v779
    %v783 = vrot.slane %v781, 6
    %784 = vrot.lane.b32.xlu0 %v783, 64
    %v785 = vpop.permute.xlu0 %784
    %v787 = vsel %vm594, %v785, 0.0
    %v788 = vld [vmem:[#allocation4 + $0x20] sm:$0xf]
    %v789 = vld [vmem:[#allocation4 + $0x24] sm:$0xf]
    %v790 = vld [vmem:[#allocation4 + $0x28] sm:$0xf]
    %v791 = vld [vmem:[#allocation4 + $0x2c] sm:$0xf]
    %v792 = vld [vmem:[#allocation4 + $0x30] sm:$0xf]
    %v793 = vld [vmem:[#allocation4 + $0x34] sm:$0xf]
    %v794 = vld [vmem:[#allocation4 + $0x38] sm:$0xf]
    %v795 = vld [vmem:[#allocation4 + $0x3c] sm:$0xf]
    %v796 = vld [vmem:[%s2 + $0x1] sm:$0x1]
    %v797 = vlaneseq
    %v798 = vshrl.u32 %v797, 7
    %v799 = vsub.s32 0, %v798
    %v800 = vrot.slane %v796, %v799
    %v805 = vunpack.c.l.b16 %v788
    %v806 = vunpack.c.l.b16 %v789
    %v807 = vunpack.c.l.b16 %v790
    %v808 = vunpack.c.l.b16 %v791
    %v809 = vpack.c.b16 %v806, %v805
    %v810 = vpack.c.b16 %v808, %v807
    %813 = vmatprep.subr.bf16.mxu0 0
    %814 = vmatpush1.bf16.msra.mxu0 %v809
    %815 = vmatprep.subr.bf16.mxu0 0
    %816 = vmatpush1.bf16.msra.mxu0 %v810
    %817 = vmatprep.subr.bf16.mxu0 0
    %818 = vmatpush1.bf16.msra.mxu0 0
    %819 = vmatprep.subr.bf16.mxu0 0
    %820 = vmatpush1.bf16.msra.mxu0 0
    %821 = vmatprep.subr.bf16.mxu0 0
    %822 = vmatpush1.bf16.msra.mxu0 0
    %823 = vmatprep.subr.bf16.mxu0 0
    %824 = vmatpush1.bf16.msra.mxu0 0
    %825 = vmatprep.subr.bf16.mxu0 0
    %826 = vmatpush1.bf16.msra.mxu0 0
    %827 = vmatprep.subr.bf16.mxu0 0
    %828 = vmatpush1.bf16.msra.mxu0 0
    %829 = vmatprep.subr.bf16.mxu0 0
    %830 = vmatpush1.bf16.msra.mxu0 0
    %831 = vmatprep.subr.bf16.mxu0 0
    %832 = vmatpush1.bf16.msra.mxu0 0
    %833 = vmatprep.subr.bf16.mxu0 0
    %834 = vmatpush1.bf16.msra.mxu0 0
    %835 = vmatprep.subr.bf16.mxu0 0
    %836 = vmatpush1.bf16.msra.mxu0 0
    %837 = vmatprep.subr.bf16.mxu0 0
    %838 = vmatpush1.bf16.msra.mxu0 0
    %839 = vmatprep.subr.bf16.mxu0 0
    %840 = vmatpush1.bf16.msra.mxu0 0
    %841 = vmatprep.subr.bf16.mxu0 0
    %842 = vmatpush1.bf16.msra.mxu0 0
    %843 = vmatprep.subr.bf16.mxu0 0
    %844 = vmatpush1.bf16.msra.mxu0 0
    %845 = vmatprep.mubr.bf16.mxu0 0
    %846 = vmatmul.mubr.bf16.gmra.mrb[0].mxu0 %v208
    %v847 = vpop.f32.mrb[0].mxu0
    %v848 = vadd.f32 %v800, %v847
    %v849 = vpop.f32.mrb[0].mxu0
    %v850 = vpop.f32.mrb[0].mxu0
    %v851 = vpop.f32.mrb[0].mxu0
    %852 = vdwg.mxu0
    %v857 = vunpack.c.l.b16 %v792
    %v858 = vunpack.c.l.b16 %v793
    %v859 = vunpack.c.l.b16 %v794
    %v860 = vunpack.c.l.b16 %v795
    %v861 = vpack.c.b16 %v858, %v857
    %v862 = vpack.c.b16 %v860, %v859
    %865 = vmatprep.subr.bf16.mxu0 0
    %866 = vmatpush1.bf16.msra.mxu0 %v861
    %867 = vmatprep.subr.bf16.mxu0 0
    %868 = vmatpush1.bf16.msra.mxu0 %v862
    %869 = vmatprep.subr.bf16.mxu0 0
    %870 = vmatpush1.bf16.msra.mxu0 0
    %871 = vmatprep.subr.bf16.mxu0 0
    %872 = vmatpush1.bf16.msra.mxu0 0
    %873 = vmatprep.subr.bf16.mxu0 0
    %874 = vmatpush1.bf16.msra.mxu0 0
    %875 = vmatprep.subr.bf16.mxu0 0
    %876 = vmatpush1.bf16.msra.mxu0 0
    %877 = vmatprep.subr.bf16.mxu0 0
    %878 = vmatpush1.bf16.msra.mxu0 0
    %879 = vmatprep.subr.bf16.mxu0 0
    %880 = vmatpush1.bf16.msra.mxu0 0
    %881 = vmatprep.subr.bf16.mxu0 0
    %882 = vmatpush1.bf16.msra.mxu0 0
    %883 = vmatprep.subr.bf16.mxu0 0
    %884 = vmatpush1.bf16.msra.mxu0 0
    %885 = vmatprep.subr.bf16.mxu0 0
    %886 = vmatpush1.bf16.msra.mxu0 0
    %887 = vmatprep.subr.bf16.mxu0 0
    %888 = vmatpush1.bf16.msra.mxu0 0
    %889 = vmatprep.subr.bf16.mxu0 0
    %890 = vmatpush1.bf16.msra.mxu0 0
    %891 = vmatprep.subr.bf16.mxu0 0
    %892 = vmatpush1.bf16.msra.mxu0 0
    %893 = vmatprep.subr.bf16.mxu0 0
    %894 = vmatpush1.bf16.msra.mxu0 0
    %895 = vmatprep.subr.bf16.mxu0 0
    %896 = vmatpush1.bf16.msra.mxu0 0
    %897 = vmatprep.mubr.bf16.mxu0 0
    %898 = vmatmul.mubr.bf16.gmra.mrb[0].mxu0 %v136
    %v899 = vpop.f32.mrb[0].mxu0
    %v900 = vadd.f32 0.0, %v899
    %v901 = vpop.f32.mrb[0].mxu0
    %v902 = vpop.f32.mrb[0].mxu0
    %v903 = vpop.f32.mrb[0].mxu0
    %904 = vdwg.mxu0
    %v905 = vadd.f32 %v848, %v900
    %v906 = vxor.u32 %v905, 2147483648
    %v907 = vmul.f32 %v906, 1.442695
    %v908 = vpow.pop %v907
    %v909 = vadd.f32 %v908, 1.0
    %v910 = vrcp.pop %v909
    %v911 = vmul.f32 1.0, %v910
    %v912 = vtanh.pop %v905
    %v913 = vmul.f32 %v911, 0.0
    %915 = vrot.lane.b32.xlu0 %v912, 32
    %v916 = vpop.permute.xlu0 %915
    %v918 = vmul.f32 %v911, %v916
    %920 = vrot.lane.b32.xlu0 %v918, 32
    %v921 = vpop.permute.xlu0 %920
    %v923 = vadd.f32 %v913, %v921
    %v924 = vtanh.pop %v923
    %926 = vrot.lane.b32.xlu0 %v924, 32
    %v927 = vpop.permute.xlu0 %926
    %v929 = vmul.f32 %v911, %v927
    %930 = vmatprep.subr.bf16.mxu0 0
    %931 = vmatpush1.bf16.msra.mxu0 %v809
    %932 = vmatprep.subr.bf16.mxu0 0
    %933 = vmatpush1.bf16.msra.mxu0 %v810
    %934 = vmatprep.subr.bf16.mxu0 0
    %935 = vmatpush1.bf16.msra.mxu0 0
    %936 = vmatprep.subr.bf16.mxu0 0
    %937 = vmatpush1.bf16.msra.mxu0 0
    %938 = vmatprep.subr.bf16.mxu0 0
    %939 = vmatpush1.bf16.msra.mxu0 0
    %940 = vmatprep.subr.bf16.mxu0 0
    %941 = vmatpush1.bf16.msra.mxu0 0
    %942 = vmatprep.subr.bf16.mxu0 0
    %943 = vmatpush1.bf16.msra.mxu0 0
    %944 = vmatprep.subr.bf16.mxu0 0
    %945 = vmatpush1.bf16.msra.mxu0 0
    %946 = vmatprep.subr.bf16.mxu0 0
    %947 = vmatpush1.bf16.msra.mxu0 0
    %948 = vmatprep.subr.bf16.mxu0 0
    %949 = vmatpush1.bf16.msra.mxu0 0
    %950 = vmatprep.subr.bf16.mxu0 0
    %951 = vmatpush1.bf16.msra.mxu0 0
    %952 = vmatprep.subr.bf16.mxu0 0
    %953 = vmatpush1.bf16.msra.mxu0 0
    %954 = vmatprep.subr.bf16.mxu0 0
    %955 = vmatpush1.bf16.msra.mxu0 0
    %956 = vmatprep.subr.bf16.mxu0 0
    %957 = vmatpush1.bf16.msra.mxu0 0
    %958 = vmatprep.subr.bf16.mxu0 0
    %959 = vmatpush1.bf16.msra.mxu0 0
    %960 = vmatprep.subr.bf16.mxu0 0
    %961 = vmatpush1.bf16.msra.mxu0 0
    %962 = vmatprep.mubr.bf16.mxu0 0
    %963 = vmatmul.mubr.bf16.gmra.mrb[0].mxu0 %v287
    %v964 = vpop.f32.mrb[0].mxu0
    %v965 = vadd.f32 %v800, %v964
    %v966 = vpop.f32.mrb[0].mxu0
    %v967 = vpop.f32.mrb[0].mxu0
    %v968 = vpop.f32.mrb[0].mxu0
    %969 = vdwg.mxu0
    %v970 = vpack.c.bf16 %v929, %v929
    %972 = vrot.lane.b32.xlu0 %v970, 64
    %v973 = vpop.permute.xlu0 %972
    %v975 = vsel %vm74, %v973, 0
    %977 = vmatprep.subr.bf16.mxu0 0
    %978 = vmatpush1.bf16.msra.mxu0 %v861
    %979 = vmatprep.subr.bf16.mxu0 0
    %980 = vmatpush1.bf16.msra.mxu0 %v862
    %981 = vmatprep.subr.bf16.mxu0 0
    %982 = vmatpush1.bf16.msra.mxu0 0
    %983 = vmatprep.subr.bf16.mxu0 0
    %984 = vmatpush1.bf16.msra.mxu0 0
    %985 = vmatprep.subr.bf16.mxu0 0
    %986 = vmatpush1.bf16.msra.mxu0 0
    %987 = vmatprep.subr.bf16.mxu0 0
    %988 = vmatpush1.bf16.msra.mxu0 0
    %989 = vmatprep.subr.bf16.mxu0 0
    %990 = vmatpush1.bf16.msra.mxu0 0
    %991 = vmatprep.subr.bf16.mxu0 0
    %992 = vmatpush1.bf16.msra.mxu0 0
    %993 = vmatprep.subr.bf16.mxu0 0
    %994 = vmatpush1.bf16.msra.mxu0 0
    %995 = vmatprep.subr.bf16.mxu0 0
    %996 = vmatpush1.bf16.msra.mxu0 0
    %997 = vmatprep.subr.bf16.mxu0 0
    %998 = vmatpush1.bf16.msra.mxu0 0
    %999 = vmatprep.subr.bf16.mxu0 0
    %1000 = vmatpush1.bf16.msra.mxu0 0
    %1001 = vmatprep.subr.bf16.mxu0 0
    %1002 = vmatpush1.bf16.msra.mxu0 0
    %1003 = vmatprep.subr.bf16.mxu0 0
    %1004 = vmatpush1.bf16.msra.mxu0 0
    %1005 = vmatprep.subr.bf16.mxu0 0
    %1006 = vmatpush1.bf16.msra.mxu0 0
    %1007 = vmatprep.subr.bf16.mxu0 0
    %1008 = vmatpush1.bf16.msra.mxu0 0
    %1009 = vmatprep.mubr.bf16.mxu0 0
    %1010 = vmatmul.mubr.bf16.gmra.mrb[0].mxu0 %v975
    %v1011 = vpop.f32.mrb[0].mxu0
    %v1012 = vadd.f32 0.0, %v1011
    %v1013 = vpop.f32.mrb[0].mxu0
    %v1014 = vpop.f32.mrb[0].mxu0
    %v1015 = vpop.f32.mrb[0].mxu0
    %1016 = vdwg.mxu0
    %v1017 = vadd.f32 %v965, %v1012
    %v1018 = vxor.u32 %v1017, 2147483648
    %v1019 = vmul.f32 %v1018, 1.442695
    %v1020 = vpow.pop %v1019
    %v1021 = vadd.f32 %v1020, 1.0
    %v1022 = vrcp.pop %v1021
    %v1023 = vmul.f32 1.0, %v1022
    %v1024 = vtanh.pop %v1017
    %v1025 = vmul.f32 %v1023, %v923
    %1027 = vrot.lane.b32.xlu0 %v1024, 32
    %v1028 = vpop.permute.xlu0 %1027
    %v1030 = vmul.f32 %v1023, %v1028
    %1032 = vrot.lane.b32.xlu0 %v1030, 32
    %v1033 = vpop.permute.xlu0 %1032
    %v1035 = vadd.f32 %v1025, %v1033
    %v1036 = vtanh.pop %v1035
    %1038 = vrot.lane.b32.xlu0 %v1036, 32
    %v1039 = vpop.permute.xlu0 %1038
    %v1041 = vmul.f32 %v1023, %v1039
    %1042 = vmatprep.subr.bf16.mxu0 0
    %1043 = vmatpush1.bf16.msra.mxu0 %v809
    %1044 = vmatprep.subr.bf16.mxu0 0
    %1045 = vmatpush1.bf16.msra.mxu0 %v810
    %1046 = vmatprep.subr.bf16.mxu0 0
    %1047 = vmatpush1.bf16.msra.mxu0 0
    %1048 = vmatprep.subr.bf16.mxu0 0
    %1049 = vmatpush1.bf16.msra.mxu0 0
    %1050 = vmatprep.subr.bf16.mxu0 0
    %1051 = vmatpush1.bf16.msra.mxu0 0
    %1052 = vmatprep.subr.bf16.mxu0 0
    %1053 = vmatpush1.bf16.msra.mxu0 0
    %1054 = vmatprep.subr.bf16.mxu0 0
    %1055 = vmatpush1.bf16.msra.mxu0 0
    %1056 = vmatprep.subr.bf16.mxu0 0
    %1057 = vmatpush1.bf16.msra.mxu0 0
    %1058 = vmatprep.subr.bf16.mxu0 0
    %1059 = vmatpush1.bf16.msra.mxu0 0
    %1060 = vmatprep.subr.bf16.mxu0 0
    %1061 = vmatpush1.bf16.msra.mxu0 0
    %1062 = vmatprep.subr.bf16.mxu0 0
    %1063 = vmatpush1.bf16.msra.mxu0 0
    %1064 = vmatprep.subr.bf16.mxu0 0
    %1065 = vmatpush1.bf16.msra.mxu0 0
    %1066 = vmatprep.subr.bf16.mxu0 0
    %1067 = vmatpush1.bf16.msra.mxu0 0
    %1068 = vmatprep.subr.bf16.mxu0 0
    %1069 = vmatpush1.bf16.msra.mxu0 0
    %1070 = vmatprep.subr.bf16.mxu0 0
    %1071 = vmatpush1.bf16.msra.mxu0 0
    %1072 = vmatprep.subr.bf16.mxu0 0
    %1073 = vmatpush1.bf16.msra.mxu0 0
    %1074 = vmatprep.mubr.bf16.mxu0 0
    %1075 = vmatmul.mubr.bf16.gmra.mrb[0].mxu0 %v366
    %v1076 = vpop.f32.mrb[0].mxu0
    %v1077 = vadd.f32 %v800, %v1076
    %v1078 = vpop.f32.mrb[0].mxu0
    %v1079 = vpop.f32.mrb[0].mxu0
    %v1080 = vpop.f32.mrb[0].mxu0
    %1081 = vdwg.mxu0
    %v1082 = vpack.c.bf16 %v1041, %v1041
    %1084 = vrot.lane.b32.xlu0 %v1082, 64
    %v1085 = vpop.permute.xlu0 %1084
    %v1087 = vsel %vm74, %v1085, 0
    %1089 = vmatprep.subr.bf16.mxu0 0
    %1090 = vmatpush1.bf16.msra.mxu0 %v861
    %1091 = vmatprep.subr.bf16.mxu0 0
    %1092 = vmatpush1.bf16.msra.mxu0 %v862
    %1093 = vmatprep.subr.bf16.mxu0 0
    %1094 = vmatpush1.bf16.msra.mxu0 0
    %1095 = vmatprep.subr.bf16.mxu0 0
    %1096 = vmatpush1.bf16.msra.mxu0 0
    %1097 = vmatprep.subr.bf16.mxu0 0
    %1098 = vmatpush1.bf16.msra.mxu0 0
    %1099 = vmatprep.subr.bf16.mxu0 0
    %1100 = vmatpush1.bf16.msra.mxu0 0
    %1101 = vmatprep.subr.bf16.mxu0 0
    %1102 = vmatpush1.bf16.msra.mxu0 0
    %1103 = vmatprep.subr.bf16.mxu0 0
    %1104 = vmatpush1.bf16.msra.mxu0 0
    %1105 = vmatprep.subr.bf16.mxu0 0
    %1106 = vmatpush1.bf16.msra.mxu0 0
    %1107 = vmatprep.subr.bf16.mxu0 0
    %1108 = vmatpush1.bf16.msra.mxu0 0
    %1109 = vmatprep.subr.bf16.mxu0 0
    %1110 = vmatpush1.bf16.msra.mxu0 0
    %1111 = vmatprep.subr.bf16.mxu0 0
    %1112 = vmatpush1.bf16.msra.mxu0 0
    %1113 = vmatprep.subr.bf16.mxu0 0
    %1114 = vmatpush1.bf16.msra.mxu0 0
    %1115 = vmatprep.subr.bf16.mxu0 0
    %1116 = vmatpush1.bf16.msra.mxu0 0
    %1117 = vmatprep.subr.bf16.mxu0 0
    %1118 = vmatpush1.bf16.msra.mxu0 0
    %1119 = vmatprep.subr.bf16.mxu0 0
    %1120 = vmatpush1.bf16.msra.mxu0 0
    %1121 = vmatprep.mubr.bf16.mxu0 0
    %1122 = vmatmul.mubr.bf16.gmra.mrb[0].mxu0 %v1087
    %v1123 = vpop.f32.mrb[0].mxu0
    %v1124 = vadd.f32 0.0, %v1123
    %v1125 = vpop.f32.mrb[0].mxu0
    %v1126 = vpop.f32.mrb[0].mxu0
    %v1127 = vpop.f32.mrb[0].mxu0
    %1128 = vdwg.mxu0
    %v1129 = vadd.f32 %v1077, %v1124
    %v1130 = vxor.u32 %v1129, 2147483648
    %v1131 = vmul.f32 %v1130, 1.442695
    %v1132 = vpow.pop %v1131
    %v1133 = vadd.f32 %v1132, 1.0
    %v1134 = vrcp.pop %v1133
    %v1135 = vmul.f32 1.0, %v1134
    %v1136 = vtanh.pop %v1129
    %v1137 = vmul.f32 %v1135, %v1035
    %1139 = vrot.lane.b32.xlu0 %v1136, 32
    %v1140 = vpop.permute.xlu0 %1139
    %v1142 = vmul.f32 %v1135, %v1140
    %1144 = vrot.lane.b32.xlu0 %v1142, 32
    %v1145 = vpop.permute.xlu0 %1144
    %v1147 = vadd.f32 %v1137, %v1145
    %v1148 = vtanh.pop %v1147
    %1150 = vrot.lane.b32.xlu0 %v1148, 32
    %v1151 = vpop.permute.xlu0 %1150
    %v1153 = vmul.f32 %v1135, %v1151
    %1154 = vmatprep.subr.bf16.mxu0 0
    %1155 = vmatpush1.bf16.msra.mxu0 %v809
    %1156 = vmatprep.subr.bf16.mxu0 0
    %1157 = vmatpush1.bf16.msra.mxu0 %v810
    %1158 = vmatprep.subr.bf16.mxu0 0
    %1159 = vmatpush1.bf16.msra.mxu0 0
    %1160 = vmatprep.subr.bf16.mxu0 0
    %1161 = vmatpush1.bf16.msra.mxu0 0
    %1162 = vmatprep.subr.bf16.mxu0 0
    %1163 = vmatpush1.bf16.msra.mxu0 0
    %1164 = vmatprep.subr.bf16.mxu0 0
    %1165 = vmatpush1.bf16.msra.mxu0 0
    %1166 = vmatprep.subr.bf16.mxu0 0
    %1167 = vmatpush1.bf16.msra.mxu0 0
    %1168 = vmatprep.subr.bf16.mxu0 0
    %1169 = vmatpush1.bf16.msra.mxu0 0
    %1170 = vmatprep.subr.bf16.mxu0 0
    %1171 = vmatpush1.bf16.msra.mxu0 0
    %1172 = vmatprep.subr.bf16.mxu0 0
    %1173 = vmatpush1.bf16.msra.mxu0 0
    %1174 = vmatprep.subr.bf16.mxu0 0
    %1175 = vmatpush1.bf16.msra.mxu0 0
    %1176 = vmatprep.subr.bf16.mxu0 0
    %1177 = vmatpush1.bf16.msra.mxu0 0
    %1178 = vmatprep.subr.bf16.mxu0 0
    %1179 = vmatpush1.bf16.msra.mxu0 0
    %1180 = vmatprep.subr.bf16.mxu0 0
    %1181 = vmatpush1.bf16.msra.mxu0 0
    %1182 = vmatprep.subr.bf16.mxu0 0
    %1183 = vmatpush1.bf16.msra.mxu0 0
    %1184 = vmatprep.subr.bf16.mxu0 0
    %1185 = vmatpush1.bf16.msra.mxu0 0
    %1186 = vmatprep.mubr.bf16.mxu0 0
    %1187 = vmatmul.mubr.bf16.gmra.mrb[0].mxu0 %v445
    %v1188 = vpop.f32.mrb[0].mxu0
    %v1189 = vadd.f32 %v800, %v1188
    %v1190 = vpop.f32.mrb[0].mxu0
    %v1191 = vpop.f32.mrb[0].mxu0
    %v1192 = vpop.f32.mrb[0].mxu0
    %1193 = vdwg.mxu0
    %v1194 = vpack.c.bf16 %v1153, %v1153
    %1196 = vrot.lane.b32.xlu0 %v1194, 64
    %v1197 = vpop.permute.xlu0 %1196
    %v1199 = vsel %vm74, %v1197, 0
    %1201 = vmatprep.subr.bf16.mxu0 0
    %1202 = vmatpush1.bf16.msra.mxu0 %v861
    %1203 = vmatprep.subr.bf16.mxu0 0
    %1204 = vmatpush1.bf16.msra.mxu0 %v862
    %1205 = vmatprep.subr.bf16.mxu0 0
    %1206 = vmatpush1.bf16.msra.mxu0 0
    %1207 = vmatprep.subr.bf16.mxu0 0
    %1208 = vmatpush1.bf16.msra.mxu0 0
    %1209 = vmatprep.subr.bf16.mxu0 0
    %1210 = vmatpush1.bf16.msra.mxu0 0
    %1211 = vmatprep.subr.bf16.mxu0 0
    %1212 = vmatpush1.bf16.msra.mxu0 0
    %1213 = vmatprep.subr.bf16.mxu0 0
    %1214 = vmatpush1.bf16.msra.mxu0 0
    %1215 = vmatprep.subr.bf16.mxu0 0
    %1216 = vmatpush1.bf16.msra.mxu0 0
    %1217 = vmatprep.subr.bf16.mxu0 0
    %1218 = vmatpush1.bf16.msra.mxu0 0
    %1219 = vmatprep.subr.bf16.mxu0 0
    %1220 = vmatpush1.bf16.msra.mxu0 0
    %1221 = vmatprep.subr.bf16.mxu0 0
    %1222 = vmatpush1.bf16.msra.mxu0 0
    %1223 = vmatprep.subr.bf16.mxu0 0
    %1224 = vmatpush1.bf16.msra.mxu0 0
    %1225 = vmatprep.subr.bf16.mxu0 0
    %1226 = vmatpush1.bf16.msra.mxu0 0
    %1227 = vmatprep.subr.bf16.mxu0 0
    %1228 = vmatpush1.bf16.msra.mxu0 0
    %1229 = vmatprep.subr.bf16.mxu0 0
    %1230 = vmatpush1.bf16.msra.mxu0 0
    %1231 = vmatprep.subr.bf16.mxu0 0
    %1232 = vmatpush1.bf16.msra.mxu0 0
    %1233 = vmatprep.mubr.bf16.mxu0 0
    %1234 = vmatmul.mubr.bf16.gmra.mrb[0].mxu0 %v1199
    %v1235 = vpop.f32.mrb[0].mxu0
    %v1236 = vadd.f32 0.0, %v1235
    %v1237 = vpop.f32.mrb[0].mxu0
    %v1238 = vpop.f32.mrb[0].mxu0
    %v1239 = vpop.f32.mrb[0].mxu0
    %1240 = vdwg.mxu0
    %v1241 = vadd.f32 %v1189, %v1236
    %v1242 = vxor.u32 %v1241, 2147483648
    %v1243 = vmul.f32 %v1242, 1.442695
    %v1244 = vpow.pop %v1243
    %v1245 = vadd.f32 %v1244, 1.0
    %v1246 = vrcp.pop %v1245
    %v1247 = vmul.f32 1.0, %v1246
    %v1248 = vtanh.pop %v1241
    %v1249 = vmul.f32 %v1247, %v1147
    %1251 = vrot.lane.b32.xlu0 %v1248, 32
    %v1252 = vpop.permute.xlu0 %1251
    %v1254 = vmul.f32 %v1247, %v1252
    %1256 = vrot.lane.b32.xlu0 %v1254, 32
    %v1257 = vpop.permute.xlu0 %1256
    %v1259 = vadd.f32 %v1249, %v1257
    %v1260 = vtanh.pop %v1259
    %1262 = vrot.lane.b32.xlu0 %v1260, 32
    %v1263 = vpop.permute.xlu0 %1262
    %v1265 = vmul.f32 %v1247, %v1263
    %1266 = vmatprep.subr.bf16.mxu0 0
    %1267 = vmatpush1.bf16.msra.mxu0 %v809
    %1268 = vmatprep.subr.bf16.mxu0 0
    %1269 = vmatpush1.bf16.msra.mxu0 %v810
    %1270 = vmatprep.subr.bf16.mxu0 0
    %1271 = vmatpush1.bf16.msra.mxu0 0
    %1272 = vmatprep.subr.bf16.mxu0 0
    %1273 = vmatpush1.bf16.msra.mxu0 0
    %1274 = vmatprep.subr.bf16.mxu0 0
    %1275 = vmatpush1.bf16.msra.mxu0 0
    %1276 = vmatprep.subr.bf16.mxu0 0
    %1277 = vmatpush1.bf16.msra.mxu0 0
    %1278 = vmatprep.subr.bf16.mxu0 0
    %1279 = vmatpush1.bf16.msra.mxu0 0
    %1280 = vmatprep.subr.bf16.mxu0 0
    %1281 = vmatpush1.bf16.msra.mxu0 0
    %1282 = vmatprep.subr.bf16.mxu0 0
    %1283 = vmatpush1.bf16.msra.mxu0 0
    %1284 = vmatprep.subr.bf16.mxu0 0
    %1285 = vmatpush1.bf16.msra.mxu0 0
    %1286 = vmatprep.subr.bf16.mxu0 0
    %1287 = vmatpush1.bf16.msra.mxu0 0
    %1288 = vmatprep.subr.bf16.mxu0 0
    %1289 = vmatpush1.bf16.msra.mxu0 0
    %1290 = vmatprep.subr.bf16.mxu0 0
    %1291 = vmatpush1.bf16.msra.mxu0 0
    %1292 = vmatprep.subr.bf16.mxu0 0
    %1293 = vmatpush1.bf16.msra.mxu0 0
    %1294 = vmatprep.subr.bf16.mxu0 0
    %1295 = vmatpush1.bf16.msra.mxu0 0
    %1296 = vmatprep.subr.bf16.mxu0 0
    %1297 = vmatpush1.bf16.msra.mxu0 0
    %1298 = vmatprep.mubr.bf16.mxu0 0
    %1299 = vmatmul.mubr.bf16.gmra.mrb[0].mxu0 %v520
    %v1300 = vpop.f32.mrb[0].mxu0
    %v1301 = vadd.f32 %v800, %v1300
    %v1302 = vpop.f32.mrb[0].mxu0
    %v1303 = vpop.f32.mrb[0].mxu0
    %v1304 = vpop.f32.mrb[0].mxu0
    %1305 = vdwg.mxu0
    %v1306 = vpack.c.bf16 %v1265, %v1265
    %1308 = vrot.lane.b32.xlu0 %v1306, 64
    %v1309 = vpop.permute.xlu0 %1308
    %v1311 = vsel %vm74, %v1309, 0
    %1313 = vmatprep.subr.bf16.mxu0 0
    %1314 = vmatpush1.bf16.msra.mxu0 %v861
    %1315 = vmatprep.subr.bf16.mxu0 0
    %1316 = vmatpush1.bf16.msra.mxu0 %v862
    %1317 = vmatprep.subr.bf16.mxu0 0
    %1318 = vmatpush1.bf16.msra.mxu0 0
    %1319 = vmatprep.subr.bf16.mxu0 0
    %1320 = vmatpush1.bf16.msra.mxu0 0
    %1321 = vmatprep.subr.bf16.mxu0 0
    %1322 = vmatpush1.bf16.msra.mxu0 0
    %1323 = vmatprep.subr.bf16.mxu0 0
    %1324 = vmatpush1.bf16.msra.mxu0 0
    %1325 = vmatprep.subr.bf16.mxu0 0
    %1326 = vmatpush1.bf16.msra.mxu0 0
    %1327 = vmatprep.subr.bf16.mxu0 0
    %1328 = vmatpush1.bf16.msra.mxu0 0
    %1329 = vmatprep.subr.bf16.mxu0 0
    %1330 = vmatpush1.bf16.msra.mxu0 0
    %1331 = vmatprep.subr.bf16.mxu0 0
    %1332 = vmatpush1.bf16.msra.mxu0 0
    %1333 = vmatprep.subr.bf16.mxu0 0
    %1334 = vmatpush1.bf16.msra.mxu0 0
    %1335 = vmatprep.subr.bf16.mxu0 0
    %1336 = vmatpush1.bf16.msra.mxu0 0
    %1337 = vmatprep.subr.bf16.mxu0 0
    %1338 = vmatpush1.bf16.msra.mxu0 0
    %1339 = vmatprep.subr.bf16.mxu0 0
    %1340 = vmatpush1.bf16.msra.mxu0 0
    %1341 = vmatprep.subr.bf16.mxu0 0
    %1342 = vmatpush1.bf16.msra.mxu0 0
    %1343 = vmatprep.subr.bf16.mxu0 0
    %1344 = vmatpush1.bf16.msra.mxu0 0
    %1345 = vmatprep.mubr.bf16.mxu0 0
    %1346 = vmatmul.mubr.bf16.gmra.mrb[0].mxu0 %v1311
    %v1347 = vpop.f32.mrb[0].mxu0
    %v1348 = vadd.f32 0.0, %v1347
    %v1349 = vpop.f32.mrb[0].mxu0
    %v1350 = vpop.f32.mrb[0].mxu0
    %v1351 = vpop.f32.mrb[0].mxu0
    %1352 = vdwg.mxu0
    %v1353 = vadd.f32 %v1301, %v1348
    %v1354 = vxor.u32 %v1353, 2147483648
    %v1355 = vmul.f32 %v1354, 1.442695
    %v1356 = vpow.pop %v1355
    %v1357 = vadd.f32 %v1356, 1.0
    %v1358 = vrcp.pop %v1357
    %v1359 = vmul.f32 1.0, %v1358
    %v1360 = vtanh.pop %v1353
    %v1361 = vmul.f32 %v1359, %v1259
    %1363 = vrot.lane.b32.xlu0 %v1360, 32
    %v1364 = vpop.permute.xlu0 %1363
    %v1366 = vmul.f32 %v1359, %v1364
    %1368 = vrot.lane.b32.xlu0 %v1366, 32
    %v1369 = vpop.permute.xlu0 %1368
    %v1371 = vadd.f32 %v1361, %v1369
    %v1372 = vtanh.pop %v1371
    %1374 = vrot.lane.b32.xlu0 %v1372, 32
    %v1375 = vpop.permute.xlu0 %1374
    %v1377 = vmul.f32 %v1359, %v1375
    %v1378 = vpack.c.bf16 %v614, %v614
    %v1380 = vsel %vm74, %v1378, 0
    %1382 = vmatprep.subr.bf16.mxu0 0
    %1383 = vmatpush1.bf16.msra.mxu0 %v809
    %1384 = vmatprep.subr.bf16.mxu0 0
    %1385 = vmatpush1.bf16.msra.mxu0 %v810
    %1386 = vmatprep.subr.bf16.mxu0 0
    %1387 = vmatpush1.bf16.msra.mxu0 0
    %1388 = vmatprep.subr.bf16.mxu0 0
    %1389 = vmatpush1.bf16.msra.mxu0 0
    %1390 = vmatprep.subr.bf16.mxu0 0
    %1391 = vmatpush1.bf16.msra.mxu0 0
    %1392 = vmatprep.subr.bf16.mxu0 0
    %1393 = vmatpush1.bf16.msra.mxu0 0
    %1394 = vmatprep.subr.bf16.mxu0 0
    %1395 = vmatpush1.bf16.msra.mxu0 0
    %1396 = vmatprep.subr.bf16.mxu0 0
    %1397 = vmatpush1.bf16.msra.mxu0 0
    %1398 = vmatprep.subr.bf16.mxu0 0
    %1399 = vmatpush1.bf16.msra.mxu0 0
    %1400 = vmatprep.subr.bf16.mxu0 0
    %1401 = vmatpush1.bf16.msra.mxu0 0
    %1402 = vmatprep.subr.bf16.mxu0 0
    %1403 = vmatpush1.bf16.msra.mxu0 0
    %1404 = vmatprep.subr.bf16.mxu0 0
    %1405 = vmatpush1.bf16.msra.mxu0 0
    %1406 = vmatprep.subr.bf16.mxu0 0
    %1407 = vmatpush1.bf16.msra.mxu0 0
    %1408 = vmatprep.subr.bf16.mxu0 0
    %1409 = vmatpush1.bf16.msra.mxu0 0
    %1410 = vmatprep.subr.bf16.mxu0 0
    %1411 = vmatpush1.bf16.msra.mxu0 0
    %1412 = vmatprep.subr.bf16.mxu0 0
    %1413 = vmatpush1.bf16.msra.mxu0 0
    %1414 = vmatprep.mubr.bf16.mxu0 0
    %1415 = vmatmul.mubr.bf16.gmra.mrb[0].mxu0 %v1380
    %v1416 = vpop.f32.mrb[0].mxu0
    %v1417 = vadd.f32 %v800, %v1416
    %v1418 = vpop.f32.mrb[0].mxu0
    %v1419 = vpop.f32.mrb[0].mxu0
    %v1420 = vpop.f32.mrb[0].mxu0
    %1421 = vdwg.mxu0
    %v1422 = vpack.c.bf16 %v1377, %v1377
    %1424 = vrot.lane.b32.xlu0 %v1422, 64
    %v1425 = vpop.permute.xlu0 %1424
    %v1427 = vsel %vm74, %v1425, 0
    %1429 = vmatprep.subr.bf16.mxu0 0
    %1430 = vmatpush1.bf16.msra.mxu0 %v861
    %1431 = vmatprep.subr.bf16.mxu0 0
    %1432 = vmatpush1.bf16.msra.mxu0 %v862
    %1433 = vmatprep.subr.bf16.mxu0 0
    %1434 = vmatpush1.bf16.msra.mxu0 0
    %1435 = vmatprep.subr.bf16.mxu0 0
    %1436 = vmatpush1.bf16.msra.mxu0 0
    %1437 = vmatprep.subr.bf16.mxu0 0
    %1438 = vmatpush1.bf16.msra.mxu0 0
    %1439 = vmatprep.subr.bf16.mxu0 0
    %1440 = vmatpush1.bf16.msra.mxu0 0
    %1441 = vmatprep.subr.bf16.mxu0 0
    %1442 = vmatpush1.bf16.msra.mxu0 0
    %1443 = vmatprep.subr.bf16.mxu0 0
    %1444 = vmatpush1.bf16.msra.mxu0 0
    %1445 = vmatprep.subr.bf16.mxu0 0
    %1446 = vmatpush1.bf16.msra.mxu0 0
    %1447 = vmatprep.subr.bf16.mxu0 0
    %1448 = vmatpush1.bf16.msra.mxu0 0
    %1449 = vmatprep.subr.bf16.mxu0 0
    %1450 = vmatpush1.bf16.msra.mxu0 0
    %1451 = vmatprep.subr.bf16.mxu0 0
    %1452 = vmatpush1.bf16.msra.mxu0 0
    %1453 = vmatprep.subr.bf16.mxu0 0
    %1454 = vmatpush1.bf16.msra.mxu0 0
    %1455 = vmatprep.subr.bf16.mxu0 0
    %1456 = vmatpush1.bf16.msra.mxu0 0
    %1457 = vmatprep.subr.bf16.mxu0 0
    %1458 = vmatpush1.bf16.msra.mxu0 0
    %1459 = vmatprep.subr.bf16.mxu0 0
    %1460 = vmatpush1.bf16.msra.mxu0 0
    %1461 = vmatprep.mubr.bf16.mxu0 0
    %1462 = vmatmul.mubr.bf16.gmra.mrb[0].mxu0 %v1427
    %v1463 = vpop.f32.mrb[0].mxu0
    %v1464 = vadd.f32 0.0, %v1463
    %v1465 = vpop.f32.mrb[0].mxu0
    %v1466 = vpop.f32.mrb[0].mxu0
    %v1467 = vpop.f32.mrb[0].mxu0
    %1468 = vdwg.mxu0
    %v1469 = vadd.f32 %v1417, %v1464
    %v1470 = vxor.u32 %v1469, 2147483648
    %v1471 = vmul.f32 %v1470, 1.442695
    %v1472 = vpow.pop %v1471
    %v1473 = vadd.f32 %v1472, 1.0
    %v1474 = vrcp.pop %v1473
    %v1475 = vmul.f32 1.0, %v1474
    %v1476 = vtanh.pop %v1469
    %v1477 = vmul.f32 %v1475, %v1371
    %1479 = vrot.lane.b32.xlu0 %v1476, 32
    %v1480 = vpop.permute.xlu0 %1479
    %v1482 = vmul.f32 %v1475, %v1480
    %1484 = vrot.lane.b32.xlu0 %v1482, 32
    %v1485 = vpop.permute.xlu0 %1484
    %v1487 = vadd.f32 %v1477, %v1485
    %v1488 = vtanh.pop %v1487
    %1490 = vrot.lane.b32.xlu0 %v1488, 32
    %v1491 = vpop.permute.xlu0 %1490
    %v1493 = vmul.f32 %v1475, %v1491
    %v1494 = vsel %vm594, %v1493, %v1377
    %v1495 = vsel %vm594, %v1487, %v1371
    %v1496 = vsel %vm594, %v1493, 0.0
    %v1497 = vpack.c.bf16 %v704, %v704
    %v1499 = vsel %vm74, %v1497, 0
    %1501 = vmatprep.subr.bf16.mxu0 0
    %1502 = vmatpush1.bf16.msra.mxu0 %v809
    %1503 = vmatprep.subr.bf16.mxu0 0
    %1504 = vmatpush1.bf16.msra.mxu0 %v810
    %1505 = vmatprep.subr.bf16.mxu0 0
    %1506 = vmatpush1.bf16.msra.mxu0 0
    %1507 = vmatprep.subr.bf16.mxu0 0
    %1508 = vmatpush1.bf16.msra.mxu0 0
    %1509 = vmatprep.subr.bf16.mxu0 0
    %1510 = vmatpush1.bf16.msra.mxu0 0
    %1511 = vmatprep.subr.bf16.mxu0 0
    %1512 = vmatpush1.bf16.msra.mxu0 0
    %1513 = vmatprep.subr.bf16.mxu0 0
    %1514 = vmatpush1.bf16.msra.mxu0 0
    %1515 = vmatprep.subr.bf16.mxu0 0
    %1516 = vmatpush1.bf16.msra.mxu0 0
    %1517 = vmatprep.subr.bf16.mxu0 0
    %1518 = vmatpush1.bf16.msra.mxu0 0
    %1519 = vmatprep.subr.bf16.mxu0 0
    %1520 = vmatpush1.bf16.msra.mxu0 0
    %1521 = vmatprep.subr.bf16.mxu0 0
    %1522 = vmatpush1.bf16.msra.mxu0 0
    %1523 = vmatprep.subr.bf16.mxu0 0
    %1524 = vmatpush1.bf16.msra.mxu0 0
    %1525 = vmatprep.subr.bf16.mxu0 0
    %1526 = vmatpush1.bf16.msra.mxu0 0
    %1527 = vmatprep.subr.bf16.mxu0 0
    %1528 = vmatpush1.bf16.msra.mxu0 0
    %1529 = vmatprep.subr.bf16.mxu0 0
    %1530 = vmatpush1.bf16.msra.mxu0 0
    %1531 = vmatprep.subr.bf16.mxu0 0
    %1532 = vmatpush1.bf16.msra.mxu0 0
    %1533 = vmatprep.mubr.bf16.mxu0 0
    %1534 = vmatmul.mubr.bf16.gmra.mrb[0].mxu0 %v1499
    %v1535 = vpop.f32.mrb[0].mxu0
    %v1536 = vadd.f32 %v800, %v1535
    %v1537 = vpop.f32.mrb[0].mxu0
    %v1538 = vpop.f32.mrb[0].mxu0
    %v1539 = vpop.f32.mrb[0].mxu0
    %1540 = vdwg.mxu0
    %v1541 = vpack.c.bf16 %v1494, %v1494
    %1543 = vrot.lane.b32.xlu0 %v1541, 64
    %v1544 = vpop.permute.xlu0 %1543
    %v1546 = vsel %vm74, %v1544, 0
    %1548 = vmatprep.subr.bf16.mxu0 0
    %1549 = vmatpush1.bf16.msra.mxu0 %v861
    %1550 = vmatprep.subr.bf16.mxu0 0
    %1551 = vmatpush1.bf16.msra.mxu0 %v862
    %1552 = vmatprep.subr.bf16.mxu0 0
    %1553 = vmatpush1.bf16.msra.mxu0 0
    %1554 = vmatprep.subr.bf16.mxu0 0
    %1555 = vmatpush1.bf16.msra.mxu0 0
    %1556 = vmatprep.subr.bf16.mxu0 0
    %1557 = vmatpush1.bf16.msra.mxu0 0
    %1558 = vmatprep.subr.bf16.mxu0 0
    %1559 = vmatpush1.bf16.msra.mxu0 0
    %1560 = vmatprep.subr.bf16.mxu0 0
    %1561 = vmatpush1.bf16.msra.mxu0 0
    %1562 = vmatprep.subr.bf16.mxu0 0
    %1563 = vmatpush1.bf16.msra.mxu0 0
    %1564 = vmatprep.subr.bf16.mxu0 0
    %1565 = vmatpush1.bf16.msra.mxu0 0
    %1566 = vmatprep.subr.bf16.mxu0 0
    %1567 = vmatpush1.bf16.msra.mxu0 0
    %1568 = vmatprep.subr.bf16.mxu0 0
    %1569 = vmatpush1.bf16.msra.mxu0 0
    %1570 = vmatprep.subr.bf16.mxu0 0
    %1571 = vmatpush1.bf16.msra.mxu0 0
    %1572 = vmatprep.subr.bf16.mxu0 0
    %1573 = vmatpush1.bf16.msra.mxu0 0
    %1574 = vmatprep.subr.bf16.mxu0 0
    %1575 = vmatpush1.bf16.msra.mxu0 0
    %1576 = vmatprep.subr.bf16.mxu0 0
    %1577 = vmatpush1.bf16.msra.mxu0 0
    %1578 = vmatprep.subr.bf16.mxu0 0
    %1579 = vmatpush1.bf16.msra.mxu0 0
    %1580 = vmatprep.mubr.bf16.mxu0 0
    %1581 = vmatmul.mubr.bf16.gmra.mrb[0].mxu0 %v1546
    %v1582 = vpop.f32.mrb[0].mxu0
    %v1583 = vadd.f32 0.0, %v1582
    %v1584 = vpop.f32.mrb[0].mxu0
    %v1585 = vpop.f32.mrb[0].mxu0
    %v1586 = vpop.f32.mrb[0].mxu0
    %1587 = vdwg.mxu0
    %v1588 = vadd.f32 %v1536, %v1583
    %v1589 = vxor.u32 %v1588, 2147483648
    %v1590 = vmul.f32 %v1589, 1.442695
    %v1591 = vpow.pop %v1590
    %v1592 = vadd.f32 %v1591, 1.0
    %v1593 = vrcp.pop %v1592
    %v1594 = vmul.f32 1.0, %v1593
    %v1595 = vtanh.pop %v1588
    %v1596 = vmul.f32 %v1594, %v1495
    %1598 = vrot.lane.b32.xlu0 %v1595, 32
    %v1599 = vpop.permute.xlu0 %1598
    %v1601 = vmul.f32 %v1594, %v1599
    %1603 = vrot.lane.b32.xlu0 %v1601, 32
    %v1604 = vpop.permute.xlu0 %1603
    %v1606 = vadd.f32 %v1596, %v1604
    %v1607 = vtanh.pop %v1606
    %1609 = vrot.lane.b32.xlu0 %v1607, 32
    %v1610 = vpop.permute.xlu0 %1609
    %v1612 = vmul.f32 %v1594, %v1610
    %v1613 = vsel %vm594, %v1612, %v1377
    %v1614 = vsel %vm594, %v1606, %v1371
    %v1615 = vsel %vm594, %v1612, 0.0
    %v1616 = vpack.c.bf16 %v787, %v787
    %v1618 = vsel %vm74, %v1616, 0
    %1620 = vmatprep.subr.bf16.mxu0 0
    %1621 = vmatpush1.bf16.msra.mxu0 %v809
    %1622 = vmatprep.subr.bf16.mxu0 0
    %1623 = vmatpush1.bf16.msra.mxu0 %v810
    %1624 = vmatprep.subr.bf16.mxu0 0
    %1625 = vmatpush1.bf16.msra.mxu0 0
    %1626 = vmatprep.subr.bf16.mxu0 0
    %1627 = vmatpush1.bf16.msra.mxu0 0
    %1628 = vmatprep.subr.bf16.mxu0 0
    %1629 = vmatpush1.bf16.msra.mxu0 0
    %1630 = vmatprep.subr.bf16.mxu0 0
    %1631 = vmatpush1.bf16.msra.mxu0 0
    %1632 = vmatprep.subr.bf16.mxu0 0
    %1633 = vmatpush1.bf16.msra.mxu0 0
    %1634 = vmatprep.subr.bf16.mxu0 0
    %1635 = vmatpush1.bf16.msra.mxu0 0
    %1636 = vmatprep.subr.bf16.mxu0 0
    %1637 = vmatpush1.bf16.msra.mxu0 0
    %1638 = vmatprep.subr.bf16.mxu0 0
    %1639 = vmatpush1.bf16.msra.mxu0 0
    %1640 = vmatprep.subr.bf16.mxu0 0
    %1641 = vmatpush1.bf16.msra.mxu0 0
    %1642 = vmatprep.subr.bf16.mxu0 0
    %1643 = vmatpush1.bf16.msra.mxu0 0
    %1644 = vmatprep.subr.bf16.mxu0 0
    %1645 = vmatpush1.bf16.msra.mxu0 0
    %1646 = vmatprep.subr.bf16.mxu0 0
    %1647 = vmatpush1.bf16.msra.mxu0 0
    %1648 = vmatprep.subr.bf16.mxu0 0
    %1649 = vmatpush1.bf16.msra.mxu0 0
    %1650 = vmatprep.subr.bf16.mxu0 0
    %1651 = vmatpush1.bf16.msra.mxu0 0
    %1652 = vmatprep.mubr.bf16.mxu0 0
    %1653 = vmatmul.mubr.bf16.gmra.mrb[0].mxu0 %v1618
    %v1654 = vpop.f32.mrb[0].mxu0
    %v1655 = vadd.f32 %v800, %v1654
    %v1656 = vpop.f32.mrb[0].mxu0
    %v1657 = vpop.f32.mrb[0].mxu0
    %v1658 = vpop.f32.mrb[0].mxu0
    %1659 = vdwg.mxu0
    %v1660 = vpack.c.bf16 %v1613, %v1613
    %1662 = vrot.lane.b32.xlu0 %v1660, 64
    %v1663 = vpop.permute.xlu0 %1662
    %v1665 = vsel %vm74, %v1663, 0
    %1667 = vmatprep.subr.bf16.mxu0 0
    %1668 = vmatpush1.bf16.msra.mxu0 %v861
    %1669 = vmatprep.subr.bf16.mxu0 0
    %1670 = vmatpush1.bf16.msra.mxu0 %v862
    %1671 = vmatprep.subr.bf16.mxu0 0
    %1672 = vmatpush1.bf16.msra.mxu0 0
    %1673 = vmatprep.subr.bf16.mxu0 0
    %1674 = vmatpush1.bf16.msra.mxu0 0
    %1675 = vmatprep.subr.bf16.mxu0 0
    %1676 = vmatpush1.bf16.msra.mxu0 0
    %1677 = vmatprep.subr.bf16.mxu0 0
    %1678 = vmatpush1.bf16.msra.mxu0 0
    %1679 = vmatprep.subr.bf16.mxu0 0
    %1680 = vmatpush1.bf16.msra.mxu0 0
    %1681 = vmatprep.subr.bf16.mxu0 0
    %1682 = vmatpush1.bf16.msra.mxu0 0
    %1683 = vmatprep.subr.bf16.mxu0 0
    %1684 = vmatpush1.bf16.msra.mxu0 0
    %1685 = vmatprep.subr.bf16.mxu0 0
    %1686 = vmatpush1.bf16.msra.mxu0 0
    %1687 = vmatprep.subr.bf16.mxu0 0
    %1688 = vmatpush1.bf16.msra.mxu0 0
    %1689 = vmatprep.subr.bf16.mxu0 0
    %1690 = vmatpush1.bf16.msra.mxu0 0
    %1691 = vmatprep.subr.bf16.mxu0 0
    %1692 = vmatpush1.bf16.msra.mxu0 0
    %1693 = vmatprep.subr.bf16.mxu0 0
    %1694 = vmatpush1.bf16.msra.mxu0 0
    %1695 = vmatprep.subr.bf16.mxu0 0
    %1696 = vmatpush1.bf16.msra.mxu0 0
    %1697 = vmatprep.subr.bf16.mxu0 0
    %1698 = vmatpush1.bf16.msra.mxu0 0
    %1699 = vmatprep.mubr.bf16.mxu0 0
    %1700 = vmatmul.mubr.bf16.gmra.mrb[0].mxu0 %v1665
    %v1701 = vpop.f32.mrb[0].mxu0
    %v1702 = vadd.f32 0.0, %v1701
    %v1703 = vpop.f32.mrb[0].mxu0
    %v1704 = vpop.f32.mrb[0].mxu0
    %v1705 = vpop.f32.mrb[0].mxu0
    %1706 = vdwg.mxu0
    %v1707 = vadd.f32 %v1655, %v1702
    %v1708 = vxor.u32 %v1707, 2147483648
    %v1709 = vmul.f32 %v1708, 1.442695
    %v1710 = vpow.pop %v1709
    %v1711 = vadd.f32 %v1710, 1.0
    %v1712 = vrcp.pop %v1711
    %v1713 = vmul.f32 1.0, %v1712
    %v1714 = vtanh.pop %v1707
    %v1715 = vmul.f32 %v1713, %v1614
    %1717 = vrot.lane.b32.xlu0 %v1714, 32
    %v1718 = vpop.permute.xlu0 %1717
    %v1720 = vmul.f32 %v1713, %v1718
    %1722 = vrot.lane.b32.xlu0 %v1720, 32
    %v1723 = vpop.permute.xlu0 %1722
    %v1725 = vadd.f32 %v1715, %v1723
    %v1726 = vtanh.pop %v1725
    %1728 = vrot.lane.b32.xlu0 %v1726, 32
    %v1729 = vpop.permute.xlu0 %1728
    %v1731 = vmul.f32 %v1713, %v1729
    %v1732 = vsel %vm594, %v1731, 0.0
    %v1734 = vrot.slane %v1041, 6
    %v1737 = vrot.slane %v1153, 4
    %v1740 = vrot.slane %v1265, 2
    %v1743 = vrot.slane %v1496, 6
    %v1746 = vrot.slane %v1615, 4
    %v1749 = vrot.slane %v1732, 2
    %vm1751 = vcmask 1041408
    %v1752 = vsel %vm1751, %v929, %v1734
    %vm1753 = vcmask 1043456
    %v1754 = vsel %vm1753, %v1752, %v1737
    %vm1755 = vcmask 1045504
    %v1756 = vsel %vm1755, %v1754, %v1740
    %v1757 = vsel %vm1751, %v1377, %v1743
    %v1758 = vsel %vm1753, %v1757, %v1746
    %v1759 = vsel %vm1755, %v1758, %v1749
    %v1760 = vpack.c.bf16 %v1759, %v1756
    %v1761 = vld [vmem:[#allocation4 + $0x40] sm:$0xf]
    %v1762 = vld [vmem:[#allocation4 + $0x44] sm:$0xf]
    %v1763 = vld [vmem:[#allocation4 + $0x48] sm:$0xf]
    %v1764 = vld [vmem:[#allocation4 + $0x4c] sm:$0xf]
    %v1765 = vld [vmem:[%s2 + $0x2] sm:$0x1]
    %v1766 = vlaneseq
    %v1767 = vshrl.u32 %v1766, 7
    %v1768 = vsub.s32 0, %v1767
    %v1769 = vrot.slane %v1765, %v1768
    %1771 = vrot.lane.b32.xlu0 %v1760, 64
    %v1772 = vpop.permute.xlu0 %1771
    %v1777 = vunpack.c.l.b16 %v1761
    %v1778 = vunpack.c.l.b16 %v1762
    %v1779 = vunpack.c.l.b16 %v1763
    %v1780 = vunpack.c.l.b16 %v1764
    %v1781 = vpack.c.b16 %v1778, %v1777
    %v1782 = vpack.c.b16 %v1780, %v1779
    %v1786 = vsel %vm74, %v1772, 0
    %1788 = vmatprep.subr.bf16.mxu0 0
    %1789 = vmatpush1.bf16.msra.mxu0 %v1781
    %1790 = vmatprep.subr.bf16.mxu0 0
    %1791 = vmatpush1.bf16.msra.mxu0 %v1782
    %1792 = vmatprep.subr.bf16.mxu0 0
    %1793 = vmatpush1.bf16.msra.mxu0 0
    %1794 = vmatprep.subr.bf16.mxu0 0
    %1795 = vmatpush1.bf16.msra.mxu0 0
    %1796 = vmatprep.subr.bf16.mxu0 0
    %1797 = vmatpush1.bf16.msra.mxu0 0
    %1798 = vmatprep.subr.bf16.mxu0 0
    %1799 = vmatpush1.bf16.msra.mxu0 0
    %1800 = vmatprep.subr.bf16.mxu0 0
    %1801 = vmatpush1.bf16.msra.mxu0 0
    %1802 = vmatprep.subr.bf16.mxu0 0
    %1803 = vmatpush1.bf16.msra.mxu0 0
    %1804 = vmatprep.subr.bf16.mxu0 0
    %1805 = vmatpush1.bf16.msra.mxu0 0
    %1806 = vmatprep.subr.bf16.mxu0 0
    %1807 = vmatpush1.bf16.msra.mxu0 0
    %1808 = vmatprep.subr.bf16.mxu0 0
    %1809 = vmatpush1.bf16.msra.mxu0 0
    %1810 = vmatprep.subr.bf16.mxu0 0
    %1811 = vmatpush1.bf16.msra.mxu0 0
    %1812 = vmatprep.subr.bf16.mxu0 0
    %1813 = vmatpush1.bf16.msra.mxu0 0
    %1814 = vmatprep.subr.bf16.mxu0 0
    %1815 = vmatpush1.bf16.msra.mxu0 0
    %1816 = vmatprep.subr.bf16.mxu0 0
    %1817 = vmatpush1.bf16.msra.mxu0 0
    %1818 = vmatprep.subr.bf16.mxu0 0
    %1819 = vmatpush1.bf16.msra.mxu0 0
    %1820 = vmatprep.mubr.bf16.mxu0 0
    %1821 = vmatmul.mubr.bf16.gmra.mrb[0].mxu0 %v1786
    %v1822 = vpop.f32.mrb[0].mxu0
    %v1823 = vadd.f32 %v1769, %v1822
    %v1824 = vpop.f32.mrb[0].mxu0
    %v1825 = vpop.f32.mrb[0].mxu0
    %v1826 = vadd.f32 %v1769, %v1825
    %v1827 = vpop.f32.mrb[0].mxu0
    %1828 = vdwg.mxu0
    %v1829 = vxor.u32 %v1823, 2147483648
    %v1830 = vxor.u32 %v1826, 2147483648
    %v1831 = vmul.f32 %v1829, 1.442695
    %v1832 = vpow.pop %v1831
    %v1833 = vmul.f32 %v1830, 1.442695
    %v1834 = vpow.pop %v1833
    %v1835 = vadd.f32 %v1832, 1.0
    %v1836 = vadd.f32 %v1834, 1.0
    %v1837 = vrcp.pop %v1835
    %v1838 = vmul.f32 1.0, %v1837
    %v1839 = vrcp.pop %v1836
    %v1840 = vmul.f32 1.0, %v1839
    %vm1841 = vcmask 15360
    %1842 = vst.msk [vmem:[%s3] sm:$0xff] %vm1841, %v1838
    %1843 = vst.msk [vmem:[%s3 + $0x8] sm:$0xff] %vm1841, %v1840
    // Predicated region
    $region22: #{tpu_custom_call.1} parent=1 // pred_check
      _
    $region23: #{tpu_custom_call.1} parent=1 // pred_check_branch
      %1845 = sbr.rel (0) target = $region25
    $region24: #{tpu_custom_call.1} parent=1 // pred_region
      _
    $region25: #{tpu_custom_call.1} parent=1 // pred_fallthru
      _
    // Predicated region
    $region26: #{tpu_custom_call.1} parent=1 // pred_check
      _
    $region27: #{tpu_custom_call.1} parent=1 // pred_check_branch
      %1847 = sbr.rel (0) target = $region29
    $region28: #{tpu_custom_call.1} parent=1 // pred_region
      _
    $region29: #{tpu_custom_call.1} parent=1 // pred_fallthru
      _
    %1848 = vsyncpa [#allocation3], 1
    %1849 = vsyncpa [#allocation5], 1

</llo_original>
